<compile_context>
chip_gen: v7x
topology: tpu7x:2x2x1
jax: 0.10.0
libtpu: 0.0.40
codegen_flags: <defaults>
</compile_context>

<pallas_src>
import jax
import jax.numpy as jnp
from jax.experimental import pallas as pl
from jax.experimental.pallas import tpu as pltpu

NEG_SLOPE = 0.01  # torch.nn.LeakyReLU default negative_slope
PAD = 128         # lane width; all internal feature dims are padded to this

# indices into the packed (8, 128, 128) bf16 weight stack
IE1, IE2 = 0, 1          # emb  FFN layers 1, 2
IG1, IG2 = 2, 3          # glob FFN layers 1, 2
IOL, IOG = 4, 5          # out  FFN layer 0: x_lat block / x_global block
IO1, IO2 = 6, 7          # out  FFN layers 1, 2

# row indices into the packed (10, 128) fp32 bias / count-row pack
RB_E0, RB_E1, RB_E2 = 0, 1, 2
RB_GCNT = 3
RB_G0, RB_G1, RB_G2 = 4, 5, 6
RB_O0, RB_O1, RB_O2 = 7, 8, 9


def _leaky(v):
    # max(v, slope*v): mul + max on the VPU (no cmp/select)
    return jnp.maximum(v, NEG_SLOPE * v)


# ----------------------------- Pallas kernel ------------------------------- #
def _make_kernel(bt, n_nodes):
    """Kernel closure over the static block shape (bt graphs, n_nodes nodes each)."""
    m_rows = bt * n_nodes

    def kernel(x_ref, ew0_ref, w_ref, gpool_ref, rows_ref, out_ref):
        def dot(a, b):
            # bf16 MXU operands, fp32 accumulation (weights already bf16)
            return jnp.dot(a.astype(jnp.bfloat16), b,
                           preferred_element_type=jnp.float32)

        rows = rows_ref[...]                                 # (10, 128) fp32
        x = x_ref[...]                                       # (bt*N, F_in) fp32

        # ---- emb FFN: F_in -> 128 (padded latent), LeakyReLU on output ----
        h = _leaky(dot(x, ew0_ref[...]) + rows[RB_E0:RB_E0 + 1])
        h = _leaky(dot(h, w_ref[IE1]) + rows[RB_E1:RB_E1 + 1])
        x_lat = _leaky(dot(h, w_ref[IE2]) + rows[RB_E2:RB_E2 + 1])   # (bt*N, 128) fp32

        # ---- global MAD pool per graph (count, mean, mean-abs-dev, max), fp32 ----
        x3 = x_lat.reshape(bt, n_nodes, PAD)                 # lane dim preserved
        mean = jnp.mean(x3, axis=1)                          # (bt, 128)
        mad = jnp.mean(jnp.abs(x3 - mean[:, None, :]), axis=1)
        mx = jnp.max(x3, axis=1)

        # ---- glob FFN: one fused dot over [mean | mad | max] + count row ----
        pooled = jnp.concatenate([mean, mad, mx], axis=-1)   # (bt, 384), lane-aligned
        g = (float(n_nodes) * rows[RB_GCNT:RB_GCNT + 1]      # cnt * W0_cnt (fp32)
             + dot(pooled, gpool_ref[...])
             + rows[RB_G0:RB_G0 + 1])
        g = _leaky(g)
        g = _leaky(dot(g, w_ref[IG1]) + rows[RB_G1:RB_G1 + 1])
        x_global = _leaky(dot(g, w_ref[IG2]) + rows[RB_G2:RB_G2 + 1])   # (bt, 128)

        # ---- out FFN: split-K over [x_lat | x_global[batch]] (no concat) ----
        gterm = dot(x_global, w_ref[IOG])                    # (bt, 128) per-graph term
        h = dot(x_lat, w_ref[IOL]) + rows[RB_O0:RB_O0 + 1]   # (bt*N, 128)
        h = (h.reshape(bt, n_nodes, PAD) + gterm[:, None, :]).reshape(m_rows, PAD)
        h = _leaky(h)
        h = _leaky(dot(h, w_ref[IO1]) + rows[RB_O1:RB_O1 + 1])
        # final_linear=True -> no activation; padded output columns are exactly 0.
        # bf16 store halves the padded HBM writeback.
        out_ref[...] = (dot(h, w_ref[IO2]) + rows[RB_O2:RB_O2 + 1]).astype(out_ref.dtype)

    return kernel


# ------------------------------ wrapper ------------------------------------ #
def _pad2(a, rows, cols):
    return jnp.pad(a, ((0, rows - a.shape[0]), (0, cols - a.shape[1])))


def _cdiv(a, b):
    return -(-a // b)


def _pick_block_graphs(batch, n_nodes, row_cap=4096):
    """Graphs per grid step: as many as fit under row_cap rows, but keep
    at least 2 grid steps when batch allows it (v7x: 2 TensorCores)."""
    bt = max(1, row_cap // n_nodes)
    if batch >= 2:
        bt = min(bt, _cdiv(batch, 2))
    return min(bt, batch)


def _pack_params(params, f_in):
    (ew0, eb0), (ew1, eb1), (ew2, eb2) = params["emb"]
    (gw0, gb0), (gw1, gb1), (gw2, gb2) = params["glob"]
    (ow0, ob0), (ow1, ob1), (ow2, ob2) = params["out"]
    n_lat = ew2.shape[1]
    n_glob = gw2.shape[1]
    assert gw0.shape[0] == 1 + 3 * n_lat
    assert ow0.shape[0] == n_lat + n_glob
    assert ow2.shape[1] == f_in

    wstack = jnp.stack([
        _pad2(ew1, PAD, PAD), _pad2(ew2, PAD, PAD),
        _pad2(gw1, PAD, PAD), _pad2(gw2, PAD, PAD),
        _pad2(ow0[:n_lat], PAD, PAD),                        # x_lat block
        _pad2(ow0[n_lat:], PAD, PAD),                        # x_global block
        _pad2(ow1, PAD, PAD), _pad2(ow2, PAD, PAD),
    ]).astype(jnp.bfloat16)                                  # (8, 128, 128)

    # fused pooled-statistic weight: rows 0..127 mean, 128..255 mad, 256..383 max
    gw_pool = jnp.concatenate([
        _pad2(gw0[1:1 + n_lat], PAD, PAD),
        _pad2(gw0[1 + n_lat:1 + 2 * n_lat], PAD, PAD),
        _pad2(gw0[1 + 2 * n_lat:1 + 3 * n_lat], PAD, PAD),
    ], axis=0).astype(jnp.bfloat16)                          # (384, 128)

    rows = jnp.concatenate([
        _pad2(eb0, 1, PAD), _pad2(eb1, 1, PAD), _pad2(eb2, 1, PAD),
        _pad2(gw0[0:1], 1, PAD),                             # count row of glob W0 (fp32)
        _pad2(gb0, 1, PAD), _pad2(gb1, 1, PAD), _pad2(gb2, 1, PAD),
        _pad2(ob0, 1, PAD), _pad2(ob1, 1, PAD), _pad2(ob2, 1, PAD),
    ], axis=0)                                               # (10, 128) fp32

    ew0_p = _pad2(ew0, ew0.shape[0], PAD).astype(jnp.bfloat16)   # (F_in, 128)
    return ew0_p, wstack, gw_pool, rows


def central_node_update(x, params):
    batch, n_nodes, f_in = x.shape
    # layout requirement: the in-kernel (Bt*N, .) <-> (Bt, N, .) reshapes are free
    # (sublane-tile compatible, activations kept fp32) when N is a multiple of 8.
    assert n_nodes % 8 == 0, "n_nodes per graph must be a multiple of 8 for this kernel"

    bt = _pick_block_graphs(batch, n_nodes)
    grid = _cdiv(batch, bt)
    batch_pad = grid * bt

    ew0_p, wstack, gw_pool, rows = _pack_params(params, f_in)

    x2 = x.reshape(batch * n_nodes, f_in)
    if batch_pad != batch:
        # pad with whole zero graphs; their (garbage) outputs are sliced away below
        x2 = jnp.pad(x2, ((0, (batch_pad - batch) * n_nodes), (0, 0)))

    out = pl.pallas_call(
        _make_kernel(bt, n_nodes),
        out_shape=jax.ShapeDtypeStruct((batch_pad * n_nodes, PAD), jnp.bfloat16),
        grid=(grid,),
        in_specs=[
            pl.BlockSpec((bt * n_nodes, f_in), lambda b: (b, 0)),     # node features
            pl.BlockSpec((f_in, PAD), lambda b: (0, 0)),              # emb layer-0 weight
            pl.BlockSpec((8, PAD, PAD), lambda b: (0, 0, 0)),         # packed 128x128 weights
            pl.BlockSpec((3 * PAD, PAD), lambda b: (0, 0)),           # fused pooled-stat weight
            pl.BlockSpec((10, PAD), lambda b: (0, 0)),                # packed biases / rows
        ],
        out_specs=pl.BlockSpec((bt * n_nodes, PAD), lambda b: (b, 0)),
        compiler_params=pltpu.CompilerParams(
            dimension_semantics=("parallel",),
            vmem_limit_bytes=48 * 1024 * 1024,
        ),
    )(x2, ew0_p, wstack, gw_pool, rows)

    out = out[: batch * n_nodes]
    # drop the zero padding columns and return in the input dtype
    return out.reshape(batch, n_nodes, PAD)[..., :f_in].astype(x.dtype)


# --------------------------- plain-JAX reference ---------------------------- #
def _ffn_apply(h, layers, final_linear):
    (w0, b0), (w1, b1), (w2, b2) = layers
    h = _leaky(jnp.dot(h, w0, preferred_element_type=jnp.float32) + b0)
    h = _leaky(jnp.dot(h, w1, preferred_element_type=jnp.float32) + b1)
    h = jnp.dot(h, w2, preferred_element_type=jnp.float32) + b2
    if not final_linear:
        h = _leaky(h)
    return h


def central_node_update_reference(x, params):
    batch, n_nodes, _ = x.shape
    x_lat = _ffn_apply(x, params["emb"], final_linear=False)          # (B, N, L)
    mean = jnp.mean(x_lat, axis=1, keepdims=True)
    mad = jnp.mean(jnp.abs(x_lat - mean), axis=1, keepdims=True)
    mx = jnp.max(x_lat, axis=1, keepdims=True)
    cnt = jnp.full((batch, 1, 1), float(n_nodes), x.dtype)
    x_glob = jnp.concatenate([cnt, mean, mad, mx], axis=-1)[:, 0, :]  # (B, 1+3L)
    x_global = _ffn_apply(x_glob, params["glob"], final_linear=False)  # (B, G)
    g_bcast = jnp.broadcast_to(x_global[:, None, :],
                               (batch, n_nodes, x_global.shape[-1]))
    cat = jnp.concatenate([x_lat, g_bcast], axis=-1)
    return _ffn_apply(cat, params["out"], final_linear=True)


# ------------------------------ param init --------------------------------- #
def init_ffn(key, n_in, n_out, hidden):
    dims = [n_in, hidden, hidden, n_out]
    layers = []
    for i in range(3):
        key, k_w, k_b = jax.random.split(key, 3)
        w = jax.random.normal(k_w, (dims[i], dims[i + 1]), jnp.float32) / jnp.sqrt(
            float(dims[i])
        )
        b = 0.01 * jax.random.normal(k_b, (1, dims[i + 1]), jnp.float32)
        layers.append((w, b))
    return layers


if __name__ == "__main__":
    # Small shapes consistent with the module.
    n_ftx_in = 4
    n_ftx_latent = 16
    n_global = 8
    hidden = 32

    root = jax.random.PRNGKey(0)
    k_x, k_x2, k_e, k_g, k_o = jax.random.split(root, 5)

    params = {
        "emb": init_ffn(k_e, n_ftx_in, n_ftx_latent, hidden),
        "glob": init_ffn(k_g, 1 + 3 * n_ftx_latent, n_global, hidden),
        "out": init_ffn(k_o, n_ftx_latent + n_global, n_ftx_in, hidden),
    }

    # bf16 MXU operands + bf16 writeback -> loosen the fp32 tolerance
    RTOL = ATOL = 6e-2

    # Case 1: B=2, N=8 (grid of 2 steps, no batch padding).
    B, N = 2, 8
    x = jax.random.normal(k_x, (B, N, n_ftx_in), jnp.float32)
    out = jax.block_until_ready(central_node_update(x, params))
    ref = central_node_update_reference(x, params)
    assert out.shape == (B, N, n_ftx_in)
    assert jnp.allclose(out, ref, rtol=RTOL, atol=ATOL), "mismatch vs reference (case 1)"

    # Case 2: B=3, N=8 (exercises the cdiv grid + zero-graph batch padding path).
    B2, N2 = 3, 8
    x2 = jax.random.normal(k_x2, (B2, N2, n_ftx_in), jnp.float32)
    out2 = jax.block_until_ready(central_node_update(x2, params))
    ref2 = central_node_update_reference(x2, params)
    assert out2.shape == (B2, N2, n_ftx_in)
    assert jnp.allclose(out2, ref2, rtol=RTOL, atol=ATOL), "mismatch vs reference (case 2)"

    print("KERNEL_OK")
</pallas_src>

<mosaic_0001>
module attributes {stable_mosaic.version = 11 : i64} {
  func.func @kernel(%arg0: i32, %arg1: memref<8x4xf32, #tpu.memory_space<vmem>>, %arg2: memref<4x128xbf16, #tpu.memory_space<vmem>>, %arg3: memref<8x128x128xbf16, #tpu.memory_space<vmem>>, %arg4: memref<384x128xbf16, #tpu.memory_space<vmem>>, %arg5: memref<10x128xf32, #tpu.memory_space<vmem>>, %arg6: memref<8x128xbf16, #tpu.memory_space<vmem>>) attributes {dimension_semantics = [#tpu.dimension_semantics<parallel>], iteration_bounds = array<i64: 2>, scalar_prefetch = 0 : i64, scratch_operands = 0 : i64, tpu.core_type = #tpu.core_type<tc>, window_params = [{transform_indices = @transform_0, window_bounds = array<i64: 8, 4>}, {pipeline_mode = #tpu.pipeline_mode<synchronous>, transform_indices = @transform_1, window_bounds = array<i64: 4, 128>}, {pipeline_mode = #tpu.pipeline_mode<synchronous>, transform_indices = @transform_2, window_bounds = array<i64: 8, 128, 128>}, {pipeline_mode = #tpu.pipeline_mode<synchronous>, transform_indices = @transform_3, window_bounds = array<i64: 384, 128>}, {pipeline_mode = #tpu.pipeline_mode<synchronous>, transform_indices = @transform_4, window_bounds = array<i64: 10, 128>}, {transform_indices = @transform_5, window_bounds = array<i64: 8, 128>}]} {
    %c0 = arith.constant 0 : index
    %c0_0 = arith.constant 0 : index
    %0 = vector.load %arg5[%c0, %c0_0] : memref<10x128xf32, #tpu.memory_space<vmem>>, vector<10x128xf32>
    %c0_1 = arith.constant 0 : index
    %c0_2 = arith.constant 0 : index
    %1 = vector.load %arg1[%c0_1, %c0_2] : memref<8x4xf32, #tpu.memory_space<vmem>>, vector<8x4xf32>
    %c0_3 = arith.constant 0 : index
    %c0_4 = arith.constant 0 : index
    %2 = vector.load %arg2[%c0_3, %c0_4] : memref<4x128xbf16, #tpu.memory_space<vmem>>, vector<4x128xbf16>
    %3 = arith.truncf %1 : vector<8x4xf32> to vector<8x4xbf16>
    %cst = arith.constant dense<0.000000e+00> : vector<8x128xf32>
    %4 = tpu.matmul %3, %2, %cst {dimension_numbers = #tpu.dot_dimension_numbers<[1], [0], [0], [1], [0, 0, 1, 1], [], []>} : vector<8x4xbf16>, vector<4x128xbf16>, vector<8x128xf32> -> vector<8x128xf32>
    %5 = vector.extract_strided_slice %0 {offsets = [0, 0], sizes = [1, 128], strides = [1, 1]} : vector<10x128xf32> to vector<1x128xf32>
    %6 = vector.broadcast %5 : vector<1x128xf32> to vector<8x128xf32>
    %7 = arith.addf %4, %6 : vector<8x128xf32>
    %cst_5 = arith.constant 0.00999999977 : f32
    %8 = vector.broadcast %cst_5 : f32 to vector<8x128xf32>
    %9 = arith.mulf %8, %7 : vector<8x128xf32>
    %10 = arith.maximumf %7, %9 : vector<8x128xf32>
    %c0_6 = arith.constant 0 : index
    %c0_7 = arith.constant 0 : index
    %c0_8 = arith.constant 0 : index
    %11 = vector.load %arg3[%c0_6, %c0_7, %c0_8] : memref<8x128x128xbf16, #tpu.memory_space<vmem>>, vector<1x128x128xbf16>
    %12 = vector.shape_cast %11 : vector<1x128x128xbf16> to vector<128x128xbf16>
    %13 = arith.truncf %10 : vector<8x128xf32> to vector<8x128xbf16>
    %cst_9 = arith.constant dense<0.000000e+00> : vector<8x128xf32>
    %14 = tpu.matmul %13, %12, %cst_9 {dimension_numbers = #tpu.dot_dimension_numbers<[1], [0], [0], [1], [0, 0, 1, 1], [], []>} : vector<8x128xbf16>, vector<128x128xbf16>, vector<8x128xf32> -> vector<8x128xf32>
    %15 = vector.extract_strided_slice %0 {offsets = [1, 0], sizes = [1, 128], strides = [1, 1]} : vector<10x128xf32> to vector<1x128xf32>
    %16 = vector.broadcast %15 : vector<1x128xf32> to vector<8x128xf32>
    %17 = arith.addf %14, %16 : vector<8x128xf32>
    %cst_10 = arith.constant 0.00999999977 : f32
    %18 = vector.broadcast %cst_10 : f32 to vector<8x128xf32>
    %19 = arith.mulf %18, %17 : vector<8x128xf32>
    %20 = arith.maximumf %17, %19 : vector<8x128xf32>
    %c1 = arith.constant 1 : index
    %c0_11 = arith.constant 0 : index
    %c0_12 = arith.constant 0 : index
    %21 = vector.load %arg3[%c1, %c0_11, %c0_12] : memref<8x128x128xbf16, #tpu.memory_space<vmem>>, vector<1x128x128xbf16>
    %22 = vector.shape_cast %21 : vector<1x128x128xbf16> to vector<128x128xbf16>
    %23 = arith.truncf %20 : vector<8x128xf32> to vector<8x128xbf16>
    %cst_13 = arith.constant dense<0.000000e+00> : vector<8x128xf32>
    %24 = tpu.matmul %23, %22, %cst_13 {dimension_numbers = #tpu.dot_dimension_numbers<[1], [0], [0], [1], [0, 0, 1, 1], [], []>} : vector<8x128xbf16>, vector<128x128xbf16>, vector<8x128xf32> -> vector<8x128xf32>
    %25 = vector.extract_strided_slice %0 {offsets = [2, 0], sizes = [1, 128], strides = [1, 1]} : vector<10x128xf32> to vector<1x128xf32>
    %26 = vector.broadcast %25 : vector<1x128xf32> to vector<8x128xf32>
    %27 = arith.addf %24, %26 : vector<8x128xf32>
    %cst_14 = arith.constant 0.00999999977 : f32
    %28 = vector.broadcast %cst_14 : f32 to vector<8x128xf32>
    %29 = arith.mulf %28, %27 : vector<8x128xf32>
    %30 = arith.maximumf %27, %29 : vector<8x128xf32>
    %31 = vector.shape_cast %30 : vector<8x128xf32> to vector<1x8x128xf32>
    %cst_15 = arith.constant dense<0.000000e+00> : vector<1x128xf32>
    %32 = vector.multi_reduction <add>, %31, %cst_15 [1] : vector<1x8x128xf32> to vector<1x128xf32>
    %cst_16 = arith.constant 8.000000e+00 : f32
    %33 = vector.broadcast %cst_16 : f32 to vector<1x128xf32>
    %34 = arith.divf %32, %33 : vector<1x128xf32>
    %35 = vector.shape_cast %34 : vector<1x128xf32> to vector<1x1x128xf32>
    %36 = vector.broadcast %35 : vector<1x1x128xf32> to vector<1x8x128xf32>
    %37 = arith.subf %31, %36 : vector<1x8x128xf32>
    %38 = math.absf %37 : vector<1x8x128xf32>
    %cst_17 = arith.constant dense<0.000000e+00> : vector<1x128xf32>
    %39 = vector.multi_reduction <add>, %38, %cst_17 [1] : vector<1x8x128xf32> to vector<1x128xf32>
    %cst_18 = arith.constant 8.000000e+00 : f32
    %40 = vector.broadcast %cst_18 : f32 to vector<1x128xf32>
    %41 = arith.divf %39, %40 : vector<1x128xf32>
    %cst_19 = arith.constant dense<0xFF800000> : vector<1x128xf32>
    %42 = vector.multi_reduction <maximumf>, %31, %cst_19 [1] : vector<1x8x128xf32> to vector<1x128xf32>
    %43 = tpu.concatenate %34, %41, %42 in 1 : vector<1x128xf32>, vector<1x128xf32>, vector<1x128xf32> -> vector<1x384xf32>
    %44 = vector.extract_strided_slice %0 {offsets = [3, 0], sizes = [1, 128], strides = [1, 1]} : vector<10x128xf32> to vector<1x128xf32>
    %cst_20 = arith.constant 8.000000e+00 : f32
    %45 = vector.broadcast %cst_20 : f32 to vector<1x128xf32>
    %46 = arith.mulf %45, %44 : vector<1x128xf32>
    %c0_21 = arith.constant 0 : index
    %c0_22 = arith.constant 0 : index
    %47 = vector.load %arg4[%c0_21, %c0_22] : memref<384x128xbf16, #tpu.memory_space<vmem>>, vector<384x128xbf16>
    %48 = arith.truncf %43 : vector<1x384xf32> to vector<1x384xbf16>
    %cst_23 = arith.constant dense<0.000000e+00> : vector<1x128xf32>
    %49 = tpu.matmul %48, %47, %cst_23 {dimension_numbers = #tpu.dot_dimension_numbers<[1], [0], [0], [1], [0, 0, 1, 1], [], []>} : vector<1x384xbf16>, vector<384x128xbf16>, vector<1x128xf32> -> vector<1x128xf32>
    %50 = arith.addf %46, %49 : vector<1x128xf32>
    %51 = vector.extract_strided_slice %0 {offsets = [4, 0], sizes = [1, 128], strides = [1, 1]} : vector<10x128xf32> to vector<1x128xf32>
    %52 = arith.addf %50, %51 : vector<1x128xf32>
    %cst_24 = arith.constant 0.00999999977 : f32
    %53 = vector.broadcast %cst_24 : f32 to vector<1x128xf32>
    %54 = arith.mulf %53, %52 : vector<1x128xf32>
    %55 = arith.maximumf %52, %54 : vector<1x128xf32>
    %c2 = arith.constant 2 : index
    %c0_25 = arith.constant 0 : index
    %c0_26 = arith.constant 0 : index
    %56 = vector.load %arg3[%c2, %c0_25, %c0_26] : memref<8x128x128xbf16, #tpu.memory_space<vmem>>, vector<1x128x128xbf16>
    %57 = vector.shape_cast %56 : vector<1x128x128xbf16> to vector<128x128xbf16>
    %58 = arith.truncf %55 : vector<1x128xf32> to vector<1x128xbf16>
    %cst_27 = arith.constant dense<0.000000e+00> : vector<1x128xf32>
    %59 = tpu.matmul %58, %57, %cst_27 {dimension_numbers = #tpu.dot_dimension_numbers<[1], [0], [0], [1], [0, 0, 1, 1], [], []>} : vector<1x128xbf16>, vector<128x128xbf16>, vector<1x128xf32> -> vector<1x128xf32>
    %60 = vector.extract_strided_slice %0 {offsets = [5, 0], sizes = [1, 128], strides = [1, 1]} : vector<10x128xf32> to vector<1x128xf32>
    %61 = arith.addf %59, %60 : vector<1x128xf32>
    %cst_28 = arith.constant 0.00999999977 : f32
    %62 = vector.broadcast %cst_28 : f32 to vector<1x128xf32>
    %63 = arith.mulf %62, %61 : vector<1x128xf32>
    %64 = arith.maximumf %61, %63 : vector<1x128xf32>
    %c3 = arith.constant 3 : index
    %c0_29 = arith.constant 0 : index
    %c0_30 = arith.constant 0 : index
    %65 = vector.load %arg3[%c3, %c0_29, %c0_30] : memref<8x128x128xbf16, #tpu.memory_space<vmem>>, vector<1x128x128xbf16>
    %66 = vector.shape_cast %65 : vector<1x128x128xbf16> to vector<128x128xbf16>
    %67 = arith.truncf %64 : vector<1x128xf32> to vector<1x128xbf16>
    %cst_31 = arith.constant dense<0.000000e+00> : vector<1x128xf32>
    %68 = tpu.matmul %67, %66, %cst_31 {dimension_numbers = #tpu.dot_dimension_numbers<[1], [0], [0], [1], [0, 0, 1, 1], [], []>} : vector<1x128xbf16>, vector<128x128xbf16>, vector<1x128xf32> -> vector<1x128xf32>
    %69 = vector.extract_strided_slice %0 {offsets = [6, 0], sizes = [1, 128], strides = [1, 1]} : vector<10x128xf32> to vector<1x128xf32>
    %70 = arith.addf %68, %69 : vector<1x128xf32>
    %cst_32 = arith.constant 0.00999999977 : f32
    %71 = vector.broadcast %cst_32 : f32 to vector<1x128xf32>
    %72 = arith.mulf %71, %70 : vector<1x128xf32>
    %73 = arith.maximumf %70, %72 : vector<1x128xf32>
    %c5 = arith.constant 5 : index
    %c0_33 = arith.constant 0 : index
    %c0_34 = arith.constant 0 : index
    %74 = vector.load %arg3[%c5, %c0_33, %c0_34] : memref<8x128x128xbf16, #tpu.memory_space<vmem>>, vector<1x128x128xbf16>
    %75 = vector.shape_cast %74 : vector<1x128x128xbf16> to vector<128x128xbf16>
    %76 = arith.truncf %73 : vector<1x128xf32> to vector<1x128xbf16>
    %cst_35 = arith.constant dense<0.000000e+00> : vector<1x128xf32>
    %77 = tpu.matmul %76, %75, %cst_35 {dimension_numbers = #tpu.dot_dimension_numbers<[1], [0], [0], [1], [0, 0, 1, 1], [], []>} : vector<1x128xbf16>, vector<128x128xbf16>, vector<1x128xf32> -> vector<1x128xf32>
    %c4 = arith.constant 4 : index
    %c0_36 = arith.constant 0 : index
    %c0_37 = arith.constant 0 : index
    %78 = vector.load %arg3[%c4, %c0_36, %c0_37] : memref<8x128x128xbf16, #tpu.memory_space<vmem>>, vector<1x128x128xbf16>
    %79 = vector.shape_cast %78 : vector<1x128x128xbf16> to vector<128x128xbf16>
    %80 = arith.truncf %30 : vector<8x128xf32> to vector<8x128xbf16>
    %cst_38 = arith.constant dense<0.000000e+00> : vector<8x128xf32>
    %81 = tpu.matmul %80, %79, %cst_38 {dimension_numbers = #tpu.dot_dimension_numbers<[1], [0], [0], [1], [0, 0, 1, 1], [], []>} : vector<8x128xbf16>, vector<128x128xbf16>, vector<8x128xf32> -> vector<8x128xf32>
    %82 = vector.extract_strided_slice %0 {offsets = [7, 0], sizes = [1, 128], strides = [1, 1]} : vector<10x128xf32> to vector<1x128xf32>
    %83 = vector.broadcast %82 : vector<1x128xf32> to vector<8x128xf32>
    %84 = arith.addf %81, %83 : vector<8x128xf32>
    %85 = vector.shape_cast %84 : vector<8x128xf32> to vector<1x8x128xf32>
    %86 = vector.shape_cast %77 : vector<1x128xf32> to vector<1x1x128xf32>
    %87 = vector.broadcast %86 : vector<1x1x128xf32> to vector<1x8x128xf32>
    %88 = arith.addf %85, %87 : vector<1x8x128xf32>
    %89 = vector.shape_cast %88 : vector<1x8x128xf32> to vector<8x128xf32>
    %cst_39 = arith.constant 0.00999999977 : f32
    %90 = vector.broadcast %cst_39 : f32 to vector<8x128xf32>
    %91 = arith.mulf %90, %89 : vector<8x128xf32>
    %92 = arith.maximumf %89, %91 : vector<8x128xf32>
    %c6 = arith.constant 6 : index
    %c0_40 = arith.constant 0 : index
    %c0_41 = arith.constant 0 : index
    %93 = vector.load %arg3[%c6, %c0_40, %c0_41] : memref<8x128x128xbf16, #tpu.memory_space<vmem>>, vector<1x128x128xbf16>
    %94 = vector.shape_cast %93 : vector<1x128x128xbf16> to vector<128x128xbf16>
    %95 = arith.truncf %92 : vector<8x128xf32> to vector<8x128xbf16>
    %cst_42 = arith.constant dense<0.000000e+00> : vector<8x128xf32>
    %96 = tpu.matmul %95, %94, %cst_42 {dimension_numbers = #tpu.dot_dimension_numbers<[1], [0], [0], [1], [0, 0, 1, 1], [], []>} : vector<8x128xbf16>, vector<128x128xbf16>, vector<8x128xf32> -> vector<8x128xf32>
    %97 = vector.extract_strided_slice %0 {offsets = [8, 0], sizes = [1, 128], strides = [1, 1]} : vector<10x128xf32> to vector<1x128xf32>
    %98 = vector.broadcast %97 : vector<1x128xf32> to vector<8x128xf32>
    %99 = arith.addf %96, %98 : vector<8x128xf32>
    %cst_43 = arith.constant 0.00999999977 : f32
    %100 = vector.broadcast %cst_43 : f32 to vector<8x128xf32>
    %101 = arith.mulf %100, %99 : vector<8x128xf32>
    %102 = arith.maximumf %99, %101 : vector<8x128xf32>
    %c7 = arith.constant 7 : index
    %c0_44 = arith.constant 0 : index
    %c0_45 = arith.constant 0 : index
    %103 = vector.load %arg3[%c7, %c0_44, %c0_45] : memref<8x128x128xbf16, #tpu.memory_space<vmem>>, vector<1x128x128xbf16>
    %104 = vector.shape_cast %103 : vector<1x128x128xbf16> to vector<128x128xbf16>
    %105 = arith.truncf %102 : vector<8x128xf32> to vector<8x128xbf16>
    %cst_46 = arith.constant dense<0.000000e+00> : vector<8x128xf32>
    %106 = tpu.matmul %105, %104, %cst_46 {dimension_numbers = #tpu.dot_dimension_numbers<[1], [0], [0], [1], [0, 0, 1, 1], [], []>} : vector<8x128xbf16>, vector<128x128xbf16>, vector<8x128xf32> -> vector<8x128xf32>
    %107 = vector.extract_strided_slice %0 {offsets = [9, 0], sizes = [1, 128], strides = [1, 1]} : vector<10x128xf32> to vector<1x128xf32>
    %108 = vector.broadcast %107 : vector<1x128xf32> to vector<8x128xf32>
    %109 = arith.addf %106, %108 : vector<8x128xf32>
    %110 = arith.truncf %109 : vector<8x128xf32> to vector<8x128xbf16>
    %c0_47 = arith.constant 0 : index
    %c0_48 = arith.constant 0 : index
    %111 = vector.load %arg6[%c0_47, %c0_48] : memref<8x128xbf16, #tpu.memory_space<vmem>>, vector<8x128xbf16>
    tpu.vector_store %arg6[%c0_47, %c0_48], %110 {strides = array<i32>} : memref<8x128xbf16, #tpu.memory_space<vmem>>, vector<8x128xbf16>,
    return
  }
  func.func @transform_0(%arg0: i32) -> (i32, i32) {
    %c0_i32 = arith.constant 0 : i32
    %c0_i32_0 = arith.constant 0 : i32
    return %arg0, %c0_i32 : i32, i32
  }
  func.func @transform_1(%arg0: i32) -> (i32, i32) {
    %c0_i32 = arith.constant 0 : i32
    %c0_i32_0 = arith.constant 0 : i32
    %c0_i32_1 = arith.constant 0 : i32
    return %c0_i32, %c0_i32_0 : i32, i32
  }
  func.func @transform_2(%arg0: i32) -> (i32, i32, i32) {
    %c0_i32 = arith.constant 0 : i32
    %c0_i32_0 = arith.constant 0 : i32
    %c0_i32_1 = arith.constant 0 : i32
    %c0_i32_2 = arith.constant 0 : i32
    return %c0_i32, %c0_i32_0, %c0_i32_1 : i32, i32, i32
  }
  func.func @transform_3(%arg0: i32) -> (i32, i32) {
    %c0_i32 = arith.constant 0 : i32
    %c0_i32_0 = arith.constant 0 : i32
    %c0_i32_1 = arith.constant 0 : i32
    return %c0_i32, %c0_i32_0 : i32, i32
  }
  func.func @transform_4(%arg0: i32) -> (i32, i32) {
    %c0_i32 = arith.constant 0 : i32
    %c0_i32_0 = arith.constant 0 : i32
    %c0_i32_1 = arith.constant 0 : i32
    return %c0_i32, %c0_i32_0 : i32, i32
  }
  func.func @transform_5(%arg0: i32) -> (i32, i32) {
    %c0_i32 = arith.constant 0 : i32
    %c0_i32_0 = arith.constant 0 : i32
    return %arg0, %c0_i32 : i32, i32
  }
}

</mosaic_0001>

<llo_original>
// kernel: tpu_custom_call.1
$region0: #{tpu_custom_call.1}
  #allocation0 [shape = 'u32[]', space=smem, size = 0x4, offset = 0x4, fixed_abs, tag = 'smem constant byte address 0x4 - core index']
  #allocation1 [shape = 'u32[144,128]{1,0:T(1,128)}', space=vmem, size = 0x12000, scoped, tag = 'internal scratch']
  %s0 = inlined_call_operand.vmem [shape: f32[16,4], index: 0, kind: input, shape index: {}]
  %s1 = inlined_call_operand.vmem [shape: bf16[4,128], index: 1, kind: input, shape index: {}]
  %s2 = inlined_call_operand.hbm [shape: bf16[8,128,128], index: 2, kind: input, shape index: {}]
  %s3 = inlined_call_operand.hbm [shape: bf16[384,128], index: 3, kind: input, shape index: {}]
  %s4 = inlined_call_operand.vmem [shape: f32[10,128], index: 4, kind: input, shape index: {}]
  %s5 = inlined_call_operand.hbm [shape: bf16[16,128], index: 5, kind: output, shape index: {}]
  %s6 = sld [smem:[#allocation0]]
  $region61: #{tpu_custom_call.1} parent=0
    _
  %s8 = ssub.s32 1, %s6
  %s9 = scalar_select 0, %s8, %s6
  $region1: #{tpu_custom_call.1} parent=0
    #allocation2 [shape = 'u8[262144]{0}', space=vmem, size = 0x40000, scoped, tag = 'input window, operand 2, single buffered']
    #allocation3 [shape = 's32[2]{0}', space=sflag, size = 0x8, scoped, tag = 'scoped memory for tpu_custom_call.1']
    #allocation4 [shape = 's32[2]{0}', space=sflag, size = 0x8, scoped, tag = 'scoped memory for tpu_custom_call.1']
    #allocation5 [shape = 'u8[98304]{0}', space=vmem, size = 0x18000, scoped, tag = 'input window, operand 3, single buffered']
    #allocation6 [shape = 's32[1]{0}', space=sflag, size = 0x4, scoped, tag = 'scoped memory for tpu_custom_call.1']
    #allocation7 [shape = 'u8[4096]{0}', space=vmem, size = 0x1000, scoped, tag = 'output window, operand 0']
    %10 = vsyncpa [#allocation3], 0
    %11 = vsyncpa [#allocation6], 0
    %12 = vsyncpa [#allocation4], 0
    %s13 = scalar_lea.sflag [#allocation4], 1
    %14 = vsyncpa %s13, 0
    loop: start=0, step=1, limit=4
    $region2: #{tpu_custom_call.1} parent=1 // loop_pre_header
      _
    $region3: #{tpu_custom_call.1} parent=1 // loop_header
      %s16 = sphi 0, %s20
      %p17 = scmp.ge.s32.totalorder %s16, 4
      %s26 = sphi 0, %s28
      %s29 = sphi 0, %s26
      %s30 = sphi 0, %s29
      %s46 = sphi 0, %s30
      %s50 = sphi 0, %s50
      %s52 = sphi 0, %s50
      %s53 = sphi 0, %s52
      %s67 = sphi 0, %s53
      %s71 = sphi 0, %s71
      %s73 = sphi 0, %s71
      %s74 = sphi 0, %s73
      %s88 = sphi 0, %s74
      %s92 = sphi 0, %s92
      %s94 = sphi 0, %s92
      %s95 = sphi 0, %s94
      %s109 = sphi 0, %s95
      %s113 = sphi 0, %s113
      %s115 = sphi 0, %s113
      %s116 = sphi 0, %s115
      %s130 = sphi 0, %s116
      %s136 = sphi 0, %s138
      %s139 = sphi 0, %s136
      %s140 = sphi 0, %s139
      %s156 = sphi 0, %s140
    $region4: #{tpu_custom_call.1} parent=1 // loop_header_branch
      %19 = sbr.rel (%p17) target = $region8
    $region5: #{tpu_custom_call.1} parent=1 // loop_body
      %s21 = ssub.s32 %s16, 1
      %s22 = ssub.s32 %s16, 2
      %s23 = sadd.s32 %s16, 1
      %s24 = ssub.s32 %s16, %s23
      %p25 = scmp.eq.s32.totalorder %s24, 0
      %s27 = sadd.s32 %s26, 1
      %s28 = scalar_select %p25, %s26, %s27
      %p31 = pneg %p25
      %p32 = scmp.eq.s32.totalorder %s16, 1
      %p33 = por %p31, %p32
      %p34 = scmp.ne.s32.totalorder %s26, %s29
      %p35 = scmp.eq.s32.totalorder %s16, 0
      %p36 = por %p34, %p35
      %p37 = scmp.ne.s32.totalorder %s26, %s29
      %p38 = scmp.eq.s32.totalorder %s21, 1
      %p39 = por %p37, %p38
      %p40 = scmp.ne.s32.totalorder %s29, %s30
      %p41 = scmp.eq.s32.totalorder %s21, 0
      %p42 = por %p40, %p41
      %p43 = scmp.ne.s32.totalorder %s29, %s30
      %p44 = scmp.eq.s32.totalorder %s22, 1
      %p45 = por %p43, %p44
      %p47 = scmp.ne.s32.totalorder %s30, %s46
      %p48 = scmp.eq.s32.totalorder %s22, 0
      %p49 = por %p47, %p48
      %s51 = sadd.s32 %s50, 1
      %p54 = scmp.eq.s32.totalorder %s16, 1
      %p55 = scmp.ne.s32.totalorder %s50, %s52
      %p56 = scmp.eq.s32.totalorder %s16, 0
      %p57 = por %p55, %p56
      %p58 = scmp.ne.s32.totalorder %s50, %s52
      %p59 = scmp.eq.s32.totalorder %s21, 1
      %p60 = por %p58, %p59
      %p61 = scmp.ne.s32.totalorder %s52, %s53
      %p62 = scmp.eq.s32.totalorder %s21, 0
      %p63 = por %p61, %p62
      %p64 = scmp.ne.s32.totalorder %s52, %s53
      %p65 = scmp.eq.s32.totalorder %s22, 1
      %p66 = por %p64, %p65
      %p68 = scmp.ne.s32.totalorder %s53, %s67
      %p69 = scmp.eq.s32.totalorder %s22, 0
      %p70 = por %p68, %p69
      %s72 = sadd.s32 %s71, 1
      %p75 = scmp.eq.s32.totalorder %s16, 1
      %p76 = scmp.ne.s32.totalorder %s71, %s73
      %p77 = scmp.eq.s32.totalorder %s16, 0
      %p78 = por %p76, %p77
      %p79 = scmp.ne.s32.totalorder %s71, %s73
      %p80 = scmp.eq.s32.totalorder %s21, 1
      %p81 = por %p79, %p80
      %p82 = scmp.ne.s32.totalorder %s73, %s74
      %p83 = scmp.eq.s32.totalorder %s21, 0
      %p84 = por %p82, %p83
      %p85 = scmp.ne.s32.totalorder %s73, %s74
      %p86 = scmp.eq.s32.totalorder %s22, 1
      %p87 = por %p85, %p86
      %p89 = scmp.ne.s32.totalorder %s74, %s88
      %p90 = scmp.eq.s32.totalorder %s22, 0
      %p91 = por %p89, %p90
      %s93 = sadd.s32 %s92, 1
      %p96 = scmp.eq.s32.totalorder %s16, 1
      %p97 = scmp.ne.s32.totalorder %s92, %s94
      %p98 = scmp.eq.s32.totalorder %s16, 0
      %p99 = por %p97, %p98
      %p100 = scmp.ne.s32.totalorder %s92, %s94
      %p101 = scmp.eq.s32.totalorder %s21, 1
      %p102 = por %p100, %p101
      %p103 = scmp.ne.s32.totalorder %s94, %s95
      %p104 = scmp.eq.s32.totalorder %s21, 0
      %p105 = por %p103, %p104
      %p106 = scmp.ne.s32.totalorder %s94, %s95
      %p107 = scmp.eq.s32.totalorder %s22, 1
      %p108 = por %p106, %p107
      %p110 = scmp.ne.s32.totalorder %s95, %s109
      %p111 = scmp.eq.s32.totalorder %s22, 0
      %p112 = por %p110, %p111
      %s114 = sadd.s32 %s113, 1
      %p117 = scmp.eq.s32.totalorder %s16, 1
      %p118 = scmp.ne.s32.totalorder %s113, %s115
      %p119 = scmp.eq.s32.totalorder %s16, 0
      %p120 = por %p118, %p119
      %p121 = scmp.ne.s32.totalorder %s113, %s115
      %p122 = scmp.eq.s32.totalorder %s21, 1
      %p123 = por %p121, %p122
      %p124 = scmp.ne.s32.totalorder %s115, %s116
      %p125 = scmp.eq.s32.totalorder %s21, 0
      %p126 = por %p124, %p125
      %p127 = scmp.ne.s32.totalorder %s115, %s116
      %p128 = scmp.eq.s32.totalorder %s22, 1
      %p129 = por %p127, %p128
      %p131 = scmp.ne.s32.totalorder %s116, %s130
      %p132 = scmp.eq.s32.totalorder %s22, 0
      %p133 = por %p131, %p132
      %s134 = ssub.s32 %s16, %s23
      %p135 = scmp.eq.s32.totalorder %s134, 0
      %s137 = sadd.s32 %s136, 1
      %s138 = scalar_select %p135, %s136, %s137
      %p141 = pneg %p135
      %p142 = scmp.eq.s32.totalorder %s16, 1
      %p143 = por %p141, %p142
      %p144 = scmp.ne.s32.totalorder %s136, %s139
      %p145 = scmp.eq.s32.totalorder %s16, 0
      %p146 = por %p144, %p145
      %p147 = scmp.ne.s32.totalorder %s136, %s139
      %p148 = scmp.eq.s32.totalorder %s21, 1
      %p149 = por %p147, %p148
      %p150 = scmp.ne.s32.totalorder %s139, %s140
      %p151 = scmp.eq.s32.totalorder %s21, 0
      %p152 = por %p150, %p151
      %p153 = scmp.ne.s32.totalorder %s139, %s140
      %p154 = scmp.eq.s32.totalorder %s22, 1
      %p155 = por %p153, %p154
      %p157 = scmp.ne.s32.totalorder %s140, %s156
      %p158 = scmp.eq.s32.totalorder %s22, 0
      %p159 = por %p157, %p158
      %p160 = scmp.le.s32.totalorder 1, %s16
      %p161 = scmp.lt.s32.totalorder %s16, 3
      %p162 = pnand %p160, %p161
      %p163 = pneg %p162
      // Predicated region
      $region9: #{tpu_custom_call.1} parent=5 // pred_check
        _
      $region10: #{tpu_custom_call.1} parent=5 // pred_check_branch
        %165 = sbr.rel (%p162) target = $region12
      $region11: #{tpu_custom_call.1} parent=5 // pred_region
        %s166 = ssub.s32 %s16, 1
        // Predicated region
        $region13: #{tpu_custom_call.1} parent=11 // pred_check
          %p167 = pneg %p63
        $region14: #{tpu_custom_call.1} parent=11 // pred_check_branch
          %169 = sbr.rel (%p167) target = $region16
        $region15: #{tpu_custom_call.1} parent=11 // pred_region
          _
        $region16: #{tpu_custom_call.1} parent=11 // pred_fallthru
          _
        // Predicated region
        $region17: #{tpu_custom_call.1} parent=11 // pred_check
          %p170 = pneg %p84
        $region18: #{tpu_custom_call.1} parent=11 // pred_check_branch
          %172 = sbr.rel (%p170) target = $region20
        $region19: #{tpu_custom_call.1} parent=11 // pred_region
          %s174 = ssub.s32 8192, 8192
          %175 = vsyncadd [#allocation3], %s174
          %s176 = sshll.u32 [#allocation2], 4
          %s177 = int_to_ptr.vmem [resolvable:$true] %s176
          %182 = dma.hbm_to_vmem [thread:$0]  %s2, 8192, %s177, [#allocation3], 64, 64, 4
        $region20: #{tpu_custom_call.1} parent=11 // pred_fallthru
          _
        // Predicated region
        $region21: #{tpu_custom_call.1} parent=11 // pred_check
          %p183 = pneg %p105
        $region22: #{tpu_custom_call.1} parent=11 // pred_check_branch
          %185 = sbr.rel (%p183) target = $region24
        $region23: #{tpu_custom_call.1} parent=11 // pred_region
          %s187 = ssub.s32 3072, 3072
          %188 = vsyncadd [#allocation6], %s187
          %s189 = sshll.u32 [#allocation5], 4
          %s190 = int_to_ptr.vmem [resolvable:$true] %s189
          %195 = dma.hbm_to_vmem [thread:$0]  %s3, 3072, %s190, [#allocation6], 64, 64, 4
        $region24: #{tpu_custom_call.1} parent=11 // pred_fallthru
          _
        // Predicated region
        $region25: #{tpu_custom_call.1} parent=11 // pred_check
          %p196 = pneg %p126
        $region26: #{tpu_custom_call.1} parent=11 // pred_check_branch
          %198 = sbr.rel (%p196) target = $region28
        $region27: #{tpu_custom_call.1} parent=11 // pred_region
          _
        $region28: #{tpu_custom_call.1} parent=11 // pred_fallthru
          _
      $region12: #{tpu_custom_call.1} parent=5 // pred_fallthru
        _
      %p199 = scmp.lt.s32.totalorder %s16, 2
      // Predicated region
      $region29: #{tpu_custom_call.1} parent=5 // pred_check
        %p200 = pneg %p199
      $region30: #{tpu_custom_call.1} parent=5 // pred_check_branch
        %202 = sbr.rel (%p200) target = $region32
      $region31: #{tpu_custom_call.1} parent=5 // pred_region
        // Predicated region
        $region33: #{tpu_custom_call.1} parent=31 // pred_check
          %p203 = pneg %p36
        $region34: #{tpu_custom_call.1} parent=31 // pred_check_branch
          %205 = sbr.rel (%p203) target = $region36
        $region35: #{tpu_custom_call.1} parent=31 // pred_region
          %p206 = scmp.lt.s32.totalorder %s16, 1
          %s207 = scalar_select %p206, %s16, 1
          %s208 = smul.addr %s207, 8
          %s209 = scalar_lea.vmem %s0, %s208
        $region36: #{tpu_custom_call.1} parent=31 // pred_fallthru
          _
      $region32: #{tpu_custom_call.1} parent=5 // pred_fallthru
        _
      %p210 = scmp.le.s32.totalorder 1, %s16
      %p211 = scmp.lt.s32.totalorder %s16, 3
      %p212 = pnand %p210, %p211
      %p213 = pneg %p212
      // Predicated region
      $region37: #{tpu_custom_call.1} parent=5 // pred_check
        _
      $region38: #{tpu_custom_call.1} parent=5 // pred_check_branch
        %215 = sbr.rel (%p212) target = $region40
      $region39: #{tpu_custom_call.1} parent=5 // pred_region
        %s216 = ssub.s32 %s16, 1
        // Predicated region
        $region41: #{tpu_custom_call.1} parent=39 // pred_check
          %p217 = pneg %p84
        $region42: #{tpu_custom_call.1} parent=39 // pred_check_branch
          %219 = sbr.rel (%p217) target = $region44
        $region43: #{tpu_custom_call.1} parent=39 // pred_region
          %220 = dma.done [#allocation3], 8192
        $region44: #{tpu_custom_call.1} parent=39 // pred_fallthru
          _
        // Predicated region
        $region45: #{tpu_custom_call.1} parent=39 // pred_check
          %p221 = pneg %p105
        $region46: #{tpu_custom_call.1} parent=39 // pred_check_branch
          %223 = sbr.rel (%p221) target = $region48
        $region47: #{tpu_custom_call.1} parent=39 // pred_region
          %224 = dma.done [#allocation6], 3072
        $region48: #{tpu_custom_call.1} parent=39 // pred_fallthru
          _
        %p225 = scmp.lt.s32.totalorder %s21, 1
        %s226 = scalar_select %p225, %s21, 1
        %s227 = smul.addr %s226, 8
        %s228 = scalar_lea.vmem %s0, %s227
        %p229 = pneg %p42
        %p230 = pneg %p39
        %p231 = pneg %p63
        %p232 = pneg %p60
        %p233 = pneg %p84
        %p234 = pneg %p81
        %p235 = pneg %p105
        %p236 = pneg %p102
        %p237 = pneg %p126
        %p238 = pneg %p123
        %p239 = pneg %p152
        %p240 = pneg %p149
        %s241 = sand.u32 %s139, 1
        %s242 = scalar_lea.sflag [#allocation4], %s241
        %s243 = sand.u32 %s139, 1
        %s244 = smul.addr %s243, 4
        %s245 = scalar_lea.vmem [#allocation7], %s244
        %p246 = scmp.lt.s32.totalorder %s21, 1
        %s247 = scalar_select %p246, %s21, 1
        %s248 = smul.addr %s247, 8
        %s249 = scalar_lea.vmem %s0, %s248
        %v251 = vld [vmem:[%s4] sm:$0xff]
        %v252 = vld [vmem:[%s4 + $0x8] sm:$0x3]
        %v253 = vld [vmem:[%s249] sm:$0xff]
        %v254 = vld [vmem:[%s1] sm:$0x3]
        %v255 = vpack.c.bf16 %v253, %v253
        %v256 = vlaneseq
        %v257 = vshrl.u32 %v256, 7
        %v258 = vsub.s32 0, %v257
        %v259 = vrot.slane %v251, %v258
        %vm260 = vcmask 31744
        %v262 = vsel %vm260, %v255, 0
        %vm264 = vcmask 1041408
        %v266 = vsel %vm264, %v254, 0
        %268 = vmatprep.subr.bf16.mxu0 0
        %269 = vmatpush1.bf16.msra.mxu0 %v266
        %270 = vmatprep.subr.bf16.mxu0 0
        %271 = vmatpush1.bf16.msra.mxu0 0
        %272 = vmatprep.subr.bf16.mxu0 0
        %273 = vmatpush1.bf16.msra.mxu0 0
        %274 = vmatprep.subr.bf16.mxu0 0
        %275 = vmatpush1.bf16.msra.mxu0 0
        %276 = vmatprep.subr.bf16.mxu0 0
        %277 = vmatpush1.bf16.msra.mxu0 0
        %278 = vmatprep.subr.bf16.mxu0 0
        %279 = vmatpush1.bf16.msra.mxu0 0
        %280 = vmatprep.subr.bf16.mxu0 0
        %281 = vmatpush1.bf16.msra.mxu0 0
        %282 = vmatprep.subr.bf16.mxu0 0
        %283 = vmatpush1.bf16.msra.mxu0 0
        %284 = vmatprep.subr.bf16.mxu0 0
        %285 = vmatpush1.bf16.msra.mxu0 0
        %286 = vmatprep.subr.bf16.mxu0 0
        %287 = vmatpush1.bf16.msra.mxu0 0
        %288 = vmatprep.subr.bf16.mxu0 0
        %289 = vmatpush1.bf16.msra.mxu0 0
        %290 = vmatprep.subr.bf16.mxu0 0
        %291 = vmatpush1.bf16.msra.mxu0 0
        %292 = vmatprep.subr.bf16.mxu0 0
        %293 = vmatpush1.bf16.msra.mxu0 0
        %294 = vmatprep.subr.bf16.mxu0 0
        %295 = vmatpush1.bf16.msra.mxu0 0
        %296 = vmatprep.subr.bf16.mxu0 0
        %297 = vmatpush1.bf16.msra.mxu0 0
        %298 = vmatprep.subr.bf16.mxu0 0
        %299 = vmatpush1.bf16.msra.mxu0 0
        %300 = vmatprep.mubr.bf16.mxu0 0
        %301 = vmatmul.mubr.bf16.gmra.mrb[0].mxu0 %v262
        %v302 = vpop.f32.mrb[0].mxu0
        %v303 = vadd.f32 %v259, %v302
        %v304 = vpop.f32.mrb[0].mxu0
        %v305 = vpop.f32.mrb[0].mxu0
        %v306 = vpop.f32.mrb[0].mxu0
        %307 = vdwg.mxu0
        %v308 = vmul.f32 %v303, 0.01
        %v309 = vmax.f32 %v303, %v308
        %v310 = vld [vmem:[#allocation2] sm:$0xf]
        %v311 = vld [vmem:[#allocation2 + $0x4] sm:$0xf]
        %v312 = vld [vmem:[#allocation2 + $0x8] sm:$0xf]
        %v313 = vld [vmem:[#allocation2 + $0xc] sm:$0xf]
        %v314 = vld [vmem:[#allocation2 + $0x10] sm:$0xf]
        %v315 = vld [vmem:[#allocation2 + $0x14] sm:$0xf]
        %v316 = vld [vmem:[#allocation2 + $0x18] sm:$0xf]
        %v317 = vld [vmem:[#allocation2 + $0x1c] sm:$0xf]
        %v318 = vld [vmem:[#allocation2 + $0x20] sm:$0xf]
        %v319 = vld [vmem:[#allocation2 + $0x24] sm:$0xf]
        %v320 = vld [vmem:[#allocation2 + $0x28] sm:$0xf]
        %v321 = vld [vmem:[#allocation2 + $0x2c] sm:$0xf]
        %v322 = vld [vmem:[#allocation2 + $0x30] sm:$0xf]
        %v323 = vld [vmem:[#allocation2 + $0x34] sm:$0xf]
        %v324 = vld [vmem:[#allocation2 + $0x38] sm:$0xf]
        %v325 = vld [vmem:[#allocation2 + $0x3c] sm:$0xf]
        %v326 = vpack.c.bf16 %v309, %v309
        %v327 = vlaneseq
        %v328 = vshrl.u32 %v327, 7
        %v329 = vsub.s32 1, %v328
        %v330 = vrot.slane %v251, %v329
        %v347 = vunpack.c.l.b16 %v310
        %v348 = vunpack.c.l.b16 %v311
        %v349 = vunpack.c.l.b16 %v312
        %v350 = vunpack.c.l.b16 %v313
        %v351 = vunpack.c.l.b16 %v314
        %v352 = vunpack.c.l.b16 %v315
        %v353 = vunpack.c.l.b16 %v316
        %v354 = vunpack.c.l.b16 %v317
        %v355 = vunpack.c.l.b16 %v318
        %v356 = vunpack.c.l.b16 %v319
        %v357 = vunpack.c.l.b16 %v320
        %v358 = vunpack.c.l.b16 %v321
        %v359 = vunpack.c.l.b16 %v322
        %v360 = vunpack.c.l.b16 %v323
        %v361 = vunpack.c.l.b16 %v324
        %v362 = vunpack.c.l.b16 %v325
        %v363 = vpack.c.b16 %v348, %v347
        %v364 = vpack.c.b16 %v350, %v349
        %v365 = vpack.c.b16 %v352, %v351
        %v366 = vpack.c.b16 %v354, %v353
        %v367 = vpack.c.b16 %v356, %v355
        %v368 = vpack.c.b16 %v358, %v357
        %v369 = vpack.c.b16 %v360, %v359
        %v370 = vpack.c.b16 %v362, %v361
        %379 = vmatprep.subr.bf16.mxu0 0
        %380 = vmatpush1.bf16.msra.mxu0 %v363
        %381 = vmatprep.subr.bf16.mxu0 0
        %382 = vmatpush1.bf16.msra.mxu0 %v364
        %383 = vmatprep.subr.bf16.mxu0 0
        %384 = vmatpush1.bf16.msra.mxu0 %v365
        %385 = vmatprep.subr.bf16.mxu0 0
        %386 = vmatpush1.bf16.msra.mxu0 %v366
        %387 = vmatprep.subr.bf16.mxu0 0
        %388 = vmatpush1.bf16.msra.mxu0 %v367
        %389 = vmatprep.subr.bf16.mxu0 0
        %390 = vmatpush1.bf16.msra.mxu0 %v368
        %391 = vmatprep.subr.bf16.mxu0 0
        %392 = vmatpush1.bf16.msra.mxu0 %v369
        %393 = vmatprep.subr.bf16.mxu0 0
        %394 = vmatpush1.bf16.msra.mxu0 %v370
        %395 = vmatprep.subr.bf16.mxu0 0
        %396 = vmatpush1.bf16.msra.mxu0 0
        %397 = vmatprep.subr.bf16.mxu0 0
        %398 = vmatpush1.bf16.msra.mxu0 0
        %399 = vmatprep.subr.bf16.mxu0 0
        %400 = vmatpush1.bf16.msra.mxu0 0
        %401 = vmatprep.subr.bf16.mxu0 0
        %402 = vmatpush1.bf16.msra.mxu0 0
        %403 = vmatprep.subr.bf16.mxu0 0
        %404 = vmatpush1.bf16.msra.mxu0 0
        %405 = vmatprep.subr.bf16.mxu0 0
        %406 = vmatpush1.bf16.msra.mxu0 0
        %407 = vmatprep.subr.bf16.mxu0 0
        %408 = vmatpush1.bf16.msra.mxu0 0
        %409 = vmatprep.subr.bf16.mxu0 0
        %410 = vmatpush1.bf16.msra.mxu0 0
        %411 = vmatprep.mubr.bf16.mxu0 0
        %412 = vmatmul.mubr.bf16.gmra.mrb[0].mxu0 %v326
        %v413 = vpop.f32.mrb[0].mxu0
        %v414 = vadd.f32 %v330, %v413
        %v415 = vpop.f32.mrb[0].mxu0
        %v416 = vpop.f32.mrb[0].mxu0
        %v417 = vpop.f32.mrb[0].mxu0
        %418 = vdwg.mxu0
        %v419 = vmul.f32 %v414, 0.01
        %v420 = vmax.f32 %v414, %v419
        %s421 = scalar_lea.vmem [#allocation2], 64
        %v422 = vld [vmem:[%s421] sm:$0xf]
        %v423 = vld [vmem:[%s421 + $0x4] sm:$0xf]
        %v424 = vld [vmem:[%s421 + $0x8] sm:$0xf]
        %v425 = vld [vmem:[%s421 + $0xc] sm:$0xf]
        %v426 = vld [vmem:[%s421 + $0x10] sm:$0xf]
        %v427 = vld [vmem:[%s421 + $0x14] sm:$0xf]
        %v428 = vld [vmem:[%s421 + $0x18] sm:$0xf]
        %v429 = vld [vmem:[%s421 + $0x1c] sm:$0xf]
        %v430 = vld [vmem:[%s421 + $0x20] sm:$0xf]
        %v431 = vld [vmem:[%s421 + $0x24] sm:$0xf]
        %v432 = vld [vmem:[%s421 + $0x28] sm:$0xf]
        %v433 = vld [vmem:[%s421 + $0x2c] sm:$0xf]
        %v434 = vld [vmem:[%s421 + $0x30] sm:$0xf]
        %v435 = vld [vmem:[%s421 + $0x34] sm:$0xf]
        %v436 = vld [vmem:[%s421 + $0x38] sm:$0xf]
        %v437 = vld [vmem:[%s421 + $0x3c] sm:$0xf]
        %v438 = vpack.c.bf16 %v420, %v420
        %v439 = vlaneseq
        %v440 = vshrl.u32 %v439, 7
        %v441 = vsub.s32 2, %v440
        %v442 = vrot.slane %v251, %v441
        %v459 = vunpack.c.l.b16 %v422
        %v460 = vunpack.c.l.b16 %v423
        %v461 = vunpack.c.l.b16 %v424
        %v462 = vunpack.c.l.b16 %v425
        %v463 = vunpack.c.l.b16 %v426
        %v464 = vunpack.c.l.b16 %v427
        %v465 = vunpack.c.l.b16 %v428
        %v466 = vunpack.c.l.b16 %v429
        %v467 = vunpack.c.l.b16 %v430
        %v468 = vunpack.c.l.b16 %v431
        %v469 = vunpack.c.l.b16 %v432
        %v470 = vunpack.c.l.b16 %v433
        %v471 = vunpack.c.l.b16 %v434
        %v472 = vunpack.c.l.b16 %v435
        %v473 = vunpack.c.l.b16 %v436
        %v474 = vunpack.c.l.b16 %v437
        %v475 = vpack.c.b16 %v460, %v459
        %v476 = vpack.c.b16 %v462, %v461
        %v477 = vpack.c.b16 %v464, %v463
        %v478 = vpack.c.b16 %v466, %v465
        %v479 = vpack.c.b16 %v468, %v467
        %v480 = vpack.c.b16 %v470, %v469
        %v481 = vpack.c.b16 %v472, %v471
        %v482 = vpack.c.b16 %v474, %v473
        %491 = vmatprep.subr.bf16.mxu0 0
        %492 = vmatpush1.bf16.msra.mxu0 %v475
        %493 = vmatprep.subr.bf16.mxu0 0
        %494 = vmatpush1.bf16.msra.mxu0 %v476
        %495 = vmatprep.subr.bf16.mxu0 0
        %496 = vmatpush1.bf16.msra.mxu0 %v477
        %497 = vmatprep.subr.bf16.mxu0 0
        %498 = vmatpush1.bf16.msra.mxu0 %v478
        %499 = vmatprep.subr.bf16.mxu0 0
        %500 = vmatpush1.bf16.msra.mxu0 %v479
        %501 = vmatprep.subr.bf16.mxu0 0
        %502 = vmatpush1.bf16.msra.mxu0 %v480
        %503 = vmatprep.subr.bf16.mxu0 0
        %504 = vmatpush1.bf16.msra.mxu0 %v481
        %505 = vmatprep.subr.bf16.mxu0 0
        %506 = vmatpush1.bf16.msra.mxu0 %v482
        %507 = vmatprep.subr.bf16.mxu0 0
        %508 = vmatpush1.bf16.msra.mxu0 0
        %509 = vmatprep.subr.bf16.mxu0 0
        %510 = vmatpush1.bf16.msra.mxu0 0
        %511 = vmatprep.subr.bf16.mxu0 0
        %512 = vmatpush1.bf16.msra.mxu0 0
        %513 = vmatprep.subr.bf16.mxu0 0
        %514 = vmatpush1.bf16.msra.mxu0 0
        %515 = vmatprep.subr.bf16.mxu0 0
        %516 = vmatpush1.bf16.msra.mxu0 0
        %517 = vmatprep.subr.bf16.mxu0 0
        %518 = vmatpush1.bf16.msra.mxu0 0
        %519 = vmatprep.subr.bf16.mxu0 0
        %520 = vmatpush1.bf16.msra.mxu0 0
        %521 = vmatprep.subr.bf16.mxu0 0
        %522 = vmatpush1.bf16.msra.mxu0 0
        %523 = vmatprep.mubr.bf16.mxu0 0
        %524 = vmatmul.mubr.bf16.gmra.mrb[0].mxu0 %v438
        %v525 = vpop.f32.mrb[0].mxu0
        %v526 = vadd.f32 %v442, %v525
        %v527 = vpop.f32.mrb[0].mxu0
        %v528 = vpop.f32.mrb[0].mxu0
        %v529 = vpop.f32.mrb[0].mxu0
        %530 = vdwg.mxu0
        %v531 = vmul.f32 %v526, 0.01
        %v532 = vmax.f32 %v526, %v531
        %v533 = vrot.slane %v532, 4
        %v534 = vadd.f32 %v532, %v533
        %v535 = vrot.slane %v534, 2
        %v536 = vadd.f32 %v534, %v535
        %v537 = vrot.slane %v536, 1
        %v538 = vadd.f32 %v536, %v537
        %v539 = vrcp.pop 8.0
        %v540 = vmul.f32 %v538, %v539
        %v541 = vsub.f32 %v532, %v540
        %v542 = vand.u32 2147483647, %v541
        %v543 = vrot.slane %v542, 4
        %v544 = vadd.f32 %v542, %v543
        %v545 = vrot.slane %v544, 2
        %v546 = vadd.f32 %v544, %v545
        %v547 = vrot.slane %v546, 1
        %v548 = vadd.f32 %v546, %v547
        %v549 = vmul.f32 %v548, %v539
        %v550 = vrot.slane %v532, 4
        %v551 = vmax.f32 %v532, %v550
        %v552 = vrot.slane %v551, 2
        %v553 = vmax.f32 %v551, %v552
        %v554 = vrot.slane %v553, 1
        %v555 = vmax.f32 %v553, %v554
        %v556 = vmul.f32 %v251, 8.0
        %v557 = vld [vmem:[#allocation5] sm:$0xf]
        %v558 = vld [vmem:[#allocation5 + $0x4] sm:$0xf]
        %v559 = vld [vmem:[#allocation5 + $0x8] sm:$0xf]
        %v560 = vld [vmem:[#allocation5 + $0xc] sm:$0xf]
        %v561 = vld [vmem:[#allocation5 + $0x10] sm:$0xf]
        %v562 = vld [vmem:[#allocation5 + $0x14] sm:$0xf]
        %v563 = vld [vmem:[#allocation5 + $0x18] sm:$0xf]
        %v564 = vld [vmem:[#allocation5 + $0x1c] sm:$0xf]
        %v565 = vld [vmem:[#allocation5 + $0x20] sm:$0xf]
        %v566 = vld [vmem:[#allocation5 + $0x24] sm:$0xf]
        %v567 = vld [vmem:[#allocation5 + $0x28] sm:$0xf]
        %v568 = vld [vmem:[#allocation5 + $0x2c] sm:$0xf]
        %v569 = vld [vmem:[#allocation5 + $0x30] sm:$0xf]
        %v570 = vld [vmem:[#allocation5 + $0x34] sm:$0xf]
        %v571 = vld [vmem:[#allocation5 + $0x38] sm:$0xf]
        %v572 = vld [vmem:[#allocation5 + $0x3c] sm:$0xf]
        %v573 = vld [vmem:[#allocation5 + $0x40] sm:$0xf]
        %v574 = vld [vmem:[#allocation5 + $0x44] sm:$0xf]
        %v575 = vld [vmem:[#allocation5 + $0x48] sm:$0xf]
        %v576 = vld [vmem:[#allocation5 + $0x4c] sm:$0xf]
        %v577 = vld [vmem:[#allocation5 + $0x50] sm:$0xf]
        %v578 = vld [vmem:[#allocation5 + $0x54] sm:$0xf]
        %v579 = vld [vmem:[#allocation5 + $0x58] sm:$0xf]
        %v580 = vld [vmem:[#allocation5 + $0x5c] sm:$0xf]
        %v581 = vld [vmem:[#allocation5 + $0x60] sm:$0xf]
        %v582 = vld [vmem:[#allocation5 + $0x64] sm:$0xf]
        %v583 = vld [vmem:[#allocation5 + $0x68] sm:$0xf]
        %v584 = vld [vmem:[#allocation5 + $0x6c] sm:$0xf]
        %v585 = vld [vmem:[#allocation5 + $0x70] sm:$0xf]
        %v586 = vld [vmem:[#allocation5 + $0x74] sm:$0xf]
        %v587 = vld [vmem:[#allocation5 + $0x78] sm:$0xf]
        %v588 = vld [vmem:[#allocation5 + $0x7c] sm:$0xf]
        %v589 = vld [vmem:[#allocation5 + $0x80] sm:$0xf]
        %v590 = vld [vmem:[#allocation5 + $0x84] sm:$0xf]
        %v591 = vld [vmem:[#allocation5 + $0x88] sm:$0xf]
        %v592 = vld [vmem:[#allocation5 + $0x8c] sm:$0xf]
        %v593 = vld [vmem:[#allocation5 + $0x90] sm:$0xf]
        %v594 = vld [vmem:[#allocation5 + $0x94] sm:$0xf]
        %v595 = vld [vmem:[#allocation5 + $0x98] sm:$0xf]
        %v596 = vld [vmem:[#allocation5 + $0x9c] sm:$0xf]
        %v597 = vld [vmem:[#allocation5 + $0xa0] sm:$0xf]
        %v598 = vld [vmem:[#allocation5 + $0xa4] sm:$0xf]
        %v599 = vld [vmem:[#allocation5 + $0xa8] sm:$0xf]
        %v600 = vld [vmem:[#allocation5 + $0xac] sm:$0xf]
        %v601 = vld [vmem:[#allocation5 + $0xb0] sm:$0xf]
        %v602 = vld [vmem:[#allocation5 + $0xb4] sm:$0xf]
        %v603 = vld [vmem:[#allocation5 + $0xb8] sm:$0xf]
        %v604 = vld [vmem:[#allocation5 + $0xbc] sm:$0xf]
        %v605 = vpack.c.bf16 %v540, %v540
        %v606 = vpack.c.bf16 %v549, %v549
        %v607 = vpack.c.bf16 %v555, %v555
        %v656 = vunpack.c.l.b16 %v557
        %v657 = vunpack.c.l.b16 %v558
        %v658 = vunpack.c.l.b16 %v559
        %v659 = vunpack.c.l.b16 %v560
        %v660 = vunpack.c.l.b16 %v561
        %v661 = vunpack.c.l.b16 %v562
        %v662 = vunpack.c.l.b16 %v563
        %v663 = vunpack.c.l.b16 %v564
        %v664 = vunpack.c.l.b16 %v565
        %v665 = vunpack.c.l.b16 %v566
        %v666 = vunpack.c.l.b16 %v567
        %v667 = vunpack.c.l.b16 %v568
        %v668 = vunpack.c.l.b16 %v569
        %v669 = vunpack.c.l.b16 %v570
        %v670 = vunpack.c.l.b16 %v571
        %v671 = vunpack.c.l.b16 %v572
        %v672 = vunpack.c.l.b16 %v573
        %v673 = vunpack.c.l.b16 %v574
        %v674 = vunpack.c.l.b16 %v575
        %v675 = vunpack.c.l.b16 %v576
        %v676 = vunpack.c.l.b16 %v577
        %v677 = vunpack.c.l.b16 %v578
        %v678 = vunpack.c.l.b16 %v579
        %v679 = vunpack.c.l.b16 %v580
        %v680 = vunpack.c.l.b16 %v581
        %v681 = vunpack.c.l.b16 %v582
        %v682 = vunpack.c.l.b16 %v583
        %v683 = vunpack.c.l.b16 %v584
        %v684 = vunpack.c.l.b16 %v585
        %v685 = vunpack.c.l.b16 %v586
        %v686 = vunpack.c.l.b16 %v587
        %v687 = vunpack.c.l.b16 %v588
        %v688 = vunpack.c.l.b16 %v589
        %v689 = vunpack.c.l.b16 %v590
        %v690 = vunpack.c.l.b16 %v591
        %v691 = vunpack.c.l.b16 %v592
        %v692 = vunpack.c.l.b16 %v593
        %v693 = vunpack.c.l.b16 %v594
        %v694 = vunpack.c.l.b16 %v595
        %v695 = vunpack.c.l.b16 %v596
        %v696 = vunpack.c.l.b16 %v597
        %v697 = vunpack.c.l.b16 %v598
        %v698 = vunpack.c.l.b16 %v599
        %v699 = vunpack.c.l.b16 %v600
        %v700 = vunpack.c.l.b16 %v601
        %v701 = vunpack.c.l.b16 %v602
        %v702 = vunpack.c.l.b16 %v603
        %v703 = vunpack.c.l.b16 %v604
        %v704 = vpack.c.b16 %v657, %v656
        %v705 = vpack.c.b16 %v659, %v658
        %v706 = vpack.c.b16 %v661, %v660
        %v707 = vpack.c.b16 %v663, %v662
        %v708 = vpack.c.b16 %v665, %v664
        %v709 = vpack.c.b16 %v667, %v666
        %v710 = vpack.c.b16 %v669, %v668
        %v711 = vpack.c.b16 %v671, %v670
        %v712 = vpack.c.b16 %v673, %v672
        %v713 = vpack.c.b16 %v675, %v674
        %v714 = vpack.c.b16 %v677, %v676
        %v715 = vpack.c.b16 %v679, %v678
        %v716 = vpack.c.b16 %v681, %v680
        %v717 = vpack.c.b16 %v683, %v682
        %v718 = vpack.c.b16 %v685, %v684
        %v719 = vpack.c.b16 %v687, %v686
        %v720 = vpack.c.b16 %v689, %v688
        %v721 = vpack.c.b16 %v691, %v690
        %v722 = vpack.c.b16 %v693, %v692
        %v723 = vpack.c.b16 %v695, %v694
        %v724 = vpack.c.b16 %v697, %v696
        %v725 = vpack.c.b16 %v699, %v698
        %v726 = vpack.c.b16 %v701, %v700
        %v727 = vpack.c.b16 %v703, %v702
        %752 = vmatprep.subr.bf16.mxu0 0
        %753 = vmatpush1.bf16.msra.mxu0 %v704
        %754 = vmatprep.subr.bf16.mxu0 0
        %755 = vmatpush1.bf16.msra.mxu0 %v705
        %756 = vmatprep.subr.bf16.mxu0 0
        %757 = vmatpush1.bf16.msra.mxu0 %v706
        %758 = vmatprep.subr.bf16.mxu0 0
        %759 = vmatpush1.bf16.msra.mxu0 %v707
        %760 = vmatprep.subr.bf16.mxu0 0
        %761 = vmatpush1.bf16.msra.mxu0 %v708
        %762 = vmatprep.subr.bf16.mxu0 0
        %763 = vmatpush1.bf16.msra.mxu0 %v709
        %764 = vmatprep.subr.bf16.mxu0 0
        %765 = vmatpush1.bf16.msra.mxu0 %v710
        %766 = vmatprep.subr.bf16.mxu0 0
        %767 = vmatpush1.bf16.msra.mxu0 %v711
        %768 = vmatprep.subr.bf16.mxu0 0
        %769 = vmatpush1.bf16.msra.mxu0 %v712
        %770 = vmatprep.subr.bf16.mxu0 0
        %771 = vmatpush1.bf16.msra.mxu0 %v713
        %772 = vmatprep.subr.bf16.mxu0 0
        %773 = vmatpush1.bf16.msra.mxu0 %v714
        %774 = vmatprep.subr.bf16.mxu0 0
        %775 = vmatpush1.bf16.msra.mxu0 %v715
        %776 = vmatprep.subr.bf16.mxu0 0
        %777 = vmatpush1.bf16.msra.mxu0 %v716
        %778 = vmatprep.subr.bf16.mxu0 0
        %779 = vmatpush1.bf16.msra.mxu0 %v717
        %780 = vmatprep.subr.bf16.mxu0 0
        %781 = vmatpush1.bf16.msra.mxu0 %v718
        %782 = vmatprep.subr.bf16.mxu0 0
        %783 = vmatpush1.bf16.msra.mxu0 %v719
        %784 = vmatprep.mubr.bf16.mxu0 %v606
        %785 = vmatmul.mubr.bf16.gmra.mrb[0].mxu0 %v605
        %v786 = vpop.f32.mrb[0].mxu0
        %v787 = vadd.f32 0.0, %v786
        %v788 = vpop.f32.mrb[0].mxu0
        %v789 = vpop.f32.mrb[0].mxu0
        %v790 = vpop.f32.mrb[0].mxu0
        %791 = vdwg.mxu0
        %792 = vmatprep.subr.bf16.mxu0 0
        %793 = vmatpush1.bf16.msra.mxu0 %v720
        %794 = vmatprep.subr.bf16.mxu0 0
        %795 = vmatpush1.bf16.msra.mxu0 %v721
        %796 = vmatprep.subr.bf16.mxu0 0
        %797 = vmatpush1.bf16.msra.mxu0 %v722
        %798 = vmatprep.subr.bf16.mxu0 0
        %799 = vmatpush1.bf16.msra.mxu0 %v723
        %800 = vmatprep.subr.bf16.mxu0 0
        %801 = vmatpush1.bf16.msra.mxu0 %v724
        %802 = vmatprep.subr.bf16.mxu0 0
        %803 = vmatpush1.bf16.msra.mxu0 %v725
        %804 = vmatprep.subr.bf16.mxu0 0
        %805 = vmatpush1.bf16.msra.mxu0 %v726
        %806 = vmatprep.subr.bf16.mxu0 0
        %807 = vmatpush1.bf16.msra.mxu0 %v727
        %808 = vmatprep.subr.bf16.mxu0 0
        %809 = vmatpush1.bf16.msra.mxu0 0
        %810 = vmatprep.subr.bf16.mxu0 0
        %811 = vmatpush1.bf16.msra.mxu0 0
        %812 = vmatprep.subr.bf16.mxu0 0
        %813 = vmatpush1.bf16.msra.mxu0 0
        %814 = vmatprep.subr.bf16.mxu0 0
        %815 = vmatpush1.bf16.msra.mxu0 0
        %816 = vmatprep.subr.bf16.mxu0 0
        %817 = vmatpush1.bf16.msra.mxu0 0
        %818 = vmatprep.subr.bf16.mxu0 0
        %819 = vmatpush1.bf16.msra.mxu0 0
        %820 = vmatprep.subr.bf16.mxu0 0
        %821 = vmatpush1.bf16.msra.mxu0 0
        %822 = vmatprep.subr.bf16.mxu0 0
        %823 = vmatpush1.bf16.msra.mxu0 0
        %824 = vmatprep.mubr.bf16.mxu0 0
        %825 = vmatmul.mubr.bf16.gmra.mrb[0].mxu0 %v607
        %v826 = vpop.f32.mrb[0].mxu0
        %v827 = vadd.f32 %v787, %v826
        %v828 = vpop.f32.mrb[0].mxu0
        %v829 = vpop.f32.mrb[0].mxu0
        %v830 = vpop.f32.mrb[0].mxu0
        %831 = vdwg.mxu0
        %v833 = vrot.slane %v827, 5
        %v835 = vadd.f32 %v556, %v833
        %v837 = vrot.slane %v251, 1
        %v839 = vadd.f32 %v835, %v837
        %v840 = vmul.f32 %v839, 0.01
        %v841 = vmax.f32 %v839, %v840
        %s842 = scalar_lea.vmem [#allocation2], 128
        %v843 = vld [vmem:[%s842] sm:$0xf]
        %v844 = vld [vmem:[%s842 + $0x4] sm:$0xf]
        %v845 = vld [vmem:[%s842 + $0x8] sm:$0xf]
        %v846 = vld [vmem:[%s842 + $0xc] sm:$0xf]
        %v847 = vld [vmem:[%s842 + $0x10] sm:$0xf]
        %v848 = vld [vmem:[%s842 + $0x14] sm:$0xf]
        %v849 = vld [vmem:[%s842 + $0x18] sm:$0xf]
        %v850 = vld [vmem:[%s842 + $0x1c] sm:$0xf]
        %v851 = vld [vmem:[%s842 + $0x20] sm:$0xf]
        %v852 = vld [vmem:[%s842 + $0x24] sm:$0xf]
        %v853 = vld [vmem:[%s842 + $0x28] sm:$0xf]
        %v854 = vld [vmem:[%s842 + $0x2c] sm:$0xf]
        %v855 = vld [vmem:[%s842 + $0x30] sm:$0xf]
        %v856 = vld [vmem:[%s842 + $0x34] sm:$0xf]
        %v857 = vld [vmem:[%s842 + $0x38] sm:$0xf]
        %v858 = vld [vmem:[%s842 + $0x3c] sm:$0xf]
        %v859 = vpack.c.bf16 %v841, %v841
        %v861 = vshrl.u32 %v859, 16
        %v863 = vrot.slane %v861, 1
        %v881 = vunpack.c.l.b16 %v843
        %v882 = vunpack.c.l.b16 %v844
        %v883 = vunpack.c.l.b16 %v845
        %v884 = vunpack.c.l.b16 %v846
        %v885 = vunpack.c.l.b16 %v847
        %v886 = vunpack.c.l.b16 %v848
        %v887 = vunpack.c.l.b16 %v849
        %v888 = vunpack.c.l.b16 %v850
        %v889 = vunpack.c.l.b16 %v851
        %v890 = vunpack.c.l.b16 %v852
        %v891 = vunpack.c.l.b16 %v853
        %v892 = vunpack.c.l.b16 %v854
        %v893 = vunpack.c.l.b16 %v855
        %v894 = vunpack.c.l.b16 %v856
        %v895 = vunpack.c.l.b16 %v857
        %v896 = vunpack.c.l.b16 %v858
        %v897 = vpack.c.b16 %v882, %v881
        %v898 = vpack.c.b16 %v884, %v883
        %v899 = vpack.c.b16 %v886, %v885
        %v900 = vpack.c.b16 %v888, %v887
        %v901 = vpack.c.b16 %v890, %v889
        %v902 = vpack.c.b16 %v892, %v891
        %v903 = vpack.c.b16 %v894, %v893
        %v904 = vpack.c.b16 %v896, %v895
        %v913 = vrot.slane %v251, 5
        %915 = vmatprep.subr.bf16.mxu0 0
        %916 = vmatpush1.bf16.msra.mxu0 %v897
        %917 = vmatprep.subr.bf16.mxu0 0
        %918 = vmatpush1.bf16.msra.mxu0 %v898
        %919 = vmatprep.subr.bf16.mxu0 0
        %920 = vmatpush1.bf16.msra.mxu0 %v899
        %921 = vmatprep.subr.bf16.mxu0 0
        %922 = vmatpush1.bf16.msra.mxu0 %v900
        %923 = vmatprep.subr.bf16.mxu0 0
        %924 = vmatpush1.bf16.msra.mxu0 %v901
        %925 = vmatprep.subr.bf16.mxu0 0
        %926 = vmatpush1.bf16.msra.mxu0 %v902
        %927 = vmatprep.subr.bf16.mxu0 0
        %928 = vmatpush1.bf16.msra.mxu0 %v903
        %929 = vmatprep.subr.bf16.mxu0 0
        %930 = vmatpush1.bf16.msra.mxu0 %v904
        %931 = vmatprep.subr.bf16.mxu0 0
        %932 = vmatpush1.bf16.msra.mxu0 0
        %933 = vmatprep.subr.bf16.mxu0 0
        %934 = vmatpush1.bf16.msra.mxu0 0
        %935 = vmatprep.subr.bf16.mxu0 0
        %936 = vmatpush1.bf16.msra.mxu0 0
        %937 = vmatprep.subr.bf16.mxu0 0
        %938 = vmatpush1.bf16.msra.mxu0 0
        %939 = vmatprep.subr.bf16.mxu0 0
        %940 = vmatpush1.bf16.msra.mxu0 0
        %941 = vmatprep.subr.bf16.mxu0 0
        %942 = vmatpush1.bf16.msra.mxu0 0
        %943 = vmatprep.subr.bf16.mxu0 0
        %944 = vmatpush1.bf16.msra.mxu0 0
        %945 = vmatprep.subr.bf16.mxu0 0
        %946 = vmatpush1.bf16.msra.mxu0 0
        %947 = vmatprep.mubr.bf16.mxu0 0
        %948 = vmatmul.mubr.bf16.gmra.mrb[0].mxu0 %v863
        %v949 = vpop.f32.mrb[0].mxu0
        %v950 = vadd.f32 %v913, %v949
        %v951 = vpop.f32.mrb[0].mxu0
        %v952 = vpop.f32.mrb[0].mxu0
        %v953 = vpop.f32.mrb[0].mxu0
        %954 = vdwg.mxu0
        %v955 = vmul.f32 %v950, 0.01
        %v956 = vmax.f32 %v950, %v955
        %s957 = scalar_lea.vmem [#allocation2], 192
        %v958 = vld [vmem:[%s957] sm:$0xf]
        %v959 = vld [vmem:[%s957 + $0x4] sm:$0xf]
        %v960 = vld [vmem:[%s957 + $0x8] sm:$0xf]
        %v961 = vld [vmem:[%s957 + $0xc] sm:$0xf]
        %v962 = vld [vmem:[%s957 + $0x10] sm:$0xf]
        %v963 = vld [vmem:[%s957 + $0x14] sm:$0xf]
        %v964 = vld [vmem:[%s957 + $0x18] sm:$0xf]
        %v965 = vld [vmem:[%s957 + $0x1c] sm:$0xf]
        %v966 = vld [vmem:[%s957 + $0x20] sm:$0xf]
        %v967 = vld [vmem:[%s957 + $0x24] sm:$0xf]
        %v968 = vld [vmem:[%s957 + $0x28] sm:$0xf]
        %v969 = vld [vmem:[%s957 + $0x2c] sm:$0xf]
        %v970 = vld [vmem:[%s957 + $0x30] sm:$0xf]
        %v971 = vld [vmem:[%s957 + $0x34] sm:$0xf]
        %v972 = vld [vmem:[%s957 + $0x38] sm:$0xf]
        %v973 = vld [vmem:[%s957 + $0x3c] sm:$0xf]
        %v974 = vpack.c.bf16 %v956, %v956
        %v991 = vunpack.c.l.b16 %v958
        %v992 = vunpack.c.l.b16 %v959
        %v993 = vunpack.c.l.b16 %v960
        %v994 = vunpack.c.l.b16 %v961
        %v995 = vunpack.c.l.b16 %v962
        %v996 = vunpack.c.l.b16 %v963
        %v997 = vunpack.c.l.b16 %v964
        %v998 = vunpack.c.l.b16 %v965
        %v999 = vunpack.c.l.b16 %v966
        %v1000 = vunpack.c.l.b16 %v967
        %v1001 = vunpack.c.l.b16 %v968
        %v1002 = vunpack.c.l.b16 %v969
        %v1003 = vunpack.c.l.b16 %v970
        %v1004 = vunpack.c.l.b16 %v971
        %v1005 = vunpack.c.l.b16 %v972
        %v1006 = vunpack.c.l.b16 %v973
        %v1007 = vpack.c.b16 %v992, %v991
        %v1008 = vpack.c.b16 %v994, %v993
        %v1009 = vpack.c.b16 %v996, %v995
        %v1010 = vpack.c.b16 %v998, %v997
        %v1011 = vpack.c.b16 %v1000, %v999
        %v1012 = vpack.c.b16 %v1002, %v1001
        %v1013 = vpack.c.b16 %v1004, %v1003
        %v1014 = vpack.c.b16 %v1006, %v1005
        %v1023 = vrot.slane %v251, 6
        %1025 = vmatprep.subr.bf16.mxu0 0
        %1026 = vmatpush1.bf16.msra.mxu0 %v1007
        %1027 = vmatprep.subr.bf16.mxu0 0
        %1028 = vmatpush1.bf16.msra.mxu0 %v1008
        %1029 = vmatprep.subr.bf16.mxu0 0
        %1030 = vmatpush1.bf16.msra.mxu0 %v1009
        %1031 = vmatprep.subr.bf16.mxu0 0
        %1032 = vmatpush1.bf16.msra.mxu0 %v1010
        %1033 = vmatprep.subr.bf16.mxu0 0
        %1034 = vmatpush1.bf16.msra.mxu0 %v1011
        %1035 = vmatprep.subr.bf16.mxu0 0
        %1036 = vmatpush1.bf16.msra.mxu0 %v1012
        %1037 = vmatprep.subr.bf16.mxu0 0
        %1038 = vmatpush1.bf16.msra.mxu0 %v1013
        %1039 = vmatprep.subr.bf16.mxu0 0
        %1040 = vmatpush1.bf16.msra.mxu0 %v1014
        %1041 = vmatprep.subr.bf16.mxu0 0
        %1042 = vmatpush1.bf16.msra.mxu0 0
        %1043 = vmatprep.subr.bf16.mxu0 0
        %1044 = vmatpush1.bf16.msra.mxu0 0
        %1045 = vmatprep.subr.bf16.mxu0 0
        %1046 = vmatpush1.bf16.msra.mxu0 0
        %1047 = vmatprep.subr.bf16.mxu0 0
        %1048 = vmatpush1.bf16.msra.mxu0 0
        %1049 = vmatprep.subr.bf16.mxu0 0
        %1050 = vmatpush1.bf16.msra.mxu0 0
        %1051 = vmatprep.subr.bf16.mxu0 0
        %1052 = vmatpush1.bf16.msra.mxu0 0
        %1053 = vmatprep.subr.bf16.mxu0 0
        %1054 = vmatpush1.bf16.msra.mxu0 0
        %1055 = vmatprep.subr.bf16.mxu0 0
        %1056 = vmatpush1.bf16.msra.mxu0 0
        %1057 = vmatprep.mubr.bf16.mxu0 0
        %1058 = vmatmul.mubr.bf16.gmra.mrb[0].mxu0 %v974
        %v1059 = vpop.f32.mrb[0].mxu0
        %v1060 = vadd.f32 %v1023, %v1059
        %v1061 = vpop.f32.mrb[0].mxu0
        %v1062 = vpop.f32.mrb[0].mxu0
        %v1063 = vpop.f32.mrb[0].mxu0
        %1064 = vdwg.mxu0
        %v1065 = vmul.f32 %v1060, 0.01
        %v1066 = vmax.f32 %v1060, %v1065
        %s1067 = scalar_lea.vmem [#allocation2], 320
        %v1068 = vld [vmem:[%s1067] sm:$0xf]
        %v1069 = vld [vmem:[%s1067 + $0x4] sm:$0xf]
        %v1070 = vld [vmem:[%s1067 + $0x8] sm:$0xf]
        %v1071 = vld [vmem:[%s1067 + $0xc] sm:$0xf]
        %v1072 = vld [vmem:[%s1067 + $0x10] sm:$0xf]
        %v1073 = vld [vmem:[%s1067 + $0x14] sm:$0xf]
        %v1074 = vld [vmem:[%s1067 + $0x18] sm:$0xf]
        %v1075 = vld [vmem:[%s1067 + $0x1c] sm:$0xf]
        %v1076 = vld [vmem:[%s1067 + $0x20] sm:$0xf]
        %v1077 = vld [vmem:[%s1067 + $0x24] sm:$0xf]
        %v1078 = vld [vmem:[%s1067 + $0x28] sm:$0xf]
        %v1079 = vld [vmem:[%s1067 + $0x2c] sm:$0xf]
        %v1080 = vld [vmem:[%s1067 + $0x30] sm:$0xf]
        %v1081 = vld [vmem:[%s1067 + $0x34] sm:$0xf]
        %v1082 = vld [vmem:[%s1067 + $0x38] sm:$0xf]
        %v1083 = vld [vmem:[%s1067 + $0x3c] sm:$0xf]
        %v1084 = vpack.c.bf16 %v1066, %v1066
        %v1101 = vunpack.c.l.b16 %v1068
        %v1102 = vunpack.c.l.b16 %v1069
        %v1103 = vunpack.c.l.b16 %v1070
        %v1104 = vunpack.c.l.b16 %v1071
        %v1105 = vunpack.c.l.b16 %v1072
        %v1106 = vunpack.c.l.b16 %v1073
        %v1107 = vunpack.c.l.b16 %v1074
        %v1108 = vunpack.c.l.b16 %v1075
        %v1109 = vunpack.c.l.b16 %v1076
        %v1110 = vunpack.c.l.b16 %v1077
        %v1111 = vunpack.c.l.b16 %v1078
        %v1112 = vunpack.c.l.b16 %v1079
        %v1113 = vunpack.c.l.b16 %v1080
        %v1114 = vunpack.c.l.b16 %v1081
        %v1115 = vunpack.c.l.b16 %v1082
        %v1116 = vunpack.c.l.b16 %v1083
        %v1117 = vpack.c.b16 %v1102, %v1101
        %v1118 = vpack.c.b16 %v1104, %v1103
        %v1119 = vpack.c.b16 %v1106, %v1105
        %v1120 = vpack.c.b16 %v1108, %v1107
        %v1121 = vpack.c.b16 %v1110, %v1109
        %v1122 = vpack.c.b16 %v1112, %v1111
        %v1123 = vpack.c.b16 %v1114, %v1113
        %v1124 = vpack.c.b16 %v1116, %v1115
        %1133 = vmatprep.subr.bf16.mxu0 0
        %1134 = vmatpush1.bf16.msra.mxu0 %v1117
        %1135 = vmatprep.subr.bf16.mxu0 0
        %1136 = vmatpush1.bf16.msra.mxu0 %v1118
        %1137 = vmatprep.subr.bf16.mxu0 0
        %1138 = vmatpush1.bf16.msra.mxu0 %v1119
        %1139 = vmatprep.subr.bf16.mxu0 0
        %1140 = vmatpush1.bf16.msra.mxu0 %v1120
        %1141 = vmatprep.subr.bf16.mxu0 0
        %1142 = vmatpush1.bf16.msra.mxu0 %v1121
        %1143 = vmatprep.subr.bf16.mxu0 0
        %1144 = vmatpush1.bf16.msra.mxu0 %v1122
        %1145 = vmatprep.subr.bf16.mxu0 0
        %1146 = vmatpush1.bf16.msra.mxu0 %v1123
        %1147 = vmatprep.subr.bf16.mxu0 0
        %1148 = vmatpush1.bf16.msra.mxu0 %v1124
        %1149 = vmatprep.subr.bf16.mxu0 0
        %1150 = vmatpush1.bf16.msra.mxu0 0
        %1151 = vmatprep.subr.bf16.mxu0 0
        %1152 = vmatpush1.bf16.msra.mxu0 0
        %1153 = vmatprep.subr.bf16.mxu0 0
        %1154 = vmatpush1.bf16.msra.mxu0 0
        %1155 = vmatprep.subr.bf16.mxu0 0
        %1156 = vmatpush1.bf16.msra.mxu0 0
        %1157 = vmatprep.subr.bf16.mxu0 0
        %1158 = vmatpush1.bf16.msra.mxu0 0
        %1159 = vmatprep.subr.bf16.mxu0 0
        %1160 = vmatpush1.bf16.msra.mxu0 0
        %1161 = vmatprep.subr.bf16.mxu0 0
        %1162 = vmatpush1.bf16.msra.mxu0 0
        %1163 = vmatprep.subr.bf16.mxu0 0
        %1164 = vmatpush1.bf16.msra.mxu0 0
        %1165 = vmatprep.mubr.bf16.mxu0 0
        %1166 = vmatmul.mubr.bf16.gmra.mrb[0].mxu0 %v1084
        %v1167 = vpop.f32.mrb[0].mxu0
        %v1168 = vadd.f32 0.0, %v1167
        %v1169 = vpop.f32.mrb[0].mxu0
        %v1170 = vpop.f32.mrb[0].mxu0
        %v1171 = vpop.f32.mrb[0].mxu0
        %1172 = vdwg.mxu0
        %s1173 = scalar_lea.vmem [#allocation2], 256
        %v1174 = vld [vmem:[%s1173] sm:$0xf]
        %v1175 = vld [vmem:[%s1173 + $0x4] sm:$0xf]
        %v1176 = vld [vmem:[%s1173 + $0x8] sm:$0xf]
        %v1177 = vld [vmem:[%s1173 + $0xc] sm:$0xf]
        %v1178 = vld [vmem:[%s1173 + $0x10] sm:$0xf]
        %v1179 = vld [vmem:[%s1173 + $0x14] sm:$0xf]
        %v1180 = vld [vmem:[%s1173 + $0x18] sm:$0xf]
        %v1181 = vld [vmem:[%s1173 + $0x1c] sm:$0xf]
        %v1182 = vld [vmem:[%s1173 + $0x20] sm:$0xf]
        %v1183 = vld [vmem:[%s1173 + $0x24] sm:$0xf]
        %v1184 = vld [vmem:[%s1173 + $0x28] sm:$0xf]
        %v1185 = vld [vmem:[%s1173 + $0x2c] sm:$0xf]
        %v1186 = vld [vmem:[%s1173 + $0x30] sm:$0xf]
        %v1187 = vld [vmem:[%s1173 + $0x34] sm:$0xf]
        %v1188 = vld [vmem:[%s1173 + $0x38] sm:$0xf]
        %v1189 = vld [vmem:[%s1173 + $0x3c] sm:$0xf]
        %v1190 = vpack.c.bf16 %v532, %v532
        %v1191 = vlaneseq
        %v1192 = vshrl.u32 %v1191, 7
        %v1193 = vsub.s32 7, %v1192
        %v1194 = vrot.slane %v251, %v1193
        %v1211 = vunpack.c.l.b16 %v1174
        %v1212 = vunpack.c.l.b16 %v1175
        %v1213 = vunpack.c.l.b16 %v1176
        %v1214 = vunpack.c.l.b16 %v1177
        %v1215 = vunpack.c.l.b16 %v1178
        %v1216 = vunpack.c.l.b16 %v1179
        %v1217 = vunpack.c.l.b16 %v1180
        %v1218 = vunpack.c.l.b16 %v1181
        %v1219 = vunpack.c.l.b16 %v1182
        %v1220 = vunpack.c.l.b16 %v1183
        %v1221 = vunpack.c.l.b16 %v1184
        %v1222 = vunpack.c.l.b16 %v1185
        %v1223 = vunpack.c.l.b16 %v1186
        %v1224 = vunpack.c.l.b16 %v1187
        %v1225 = vunpack.c.l.b16 %v1188
        %v1226 = vunpack.c.l.b16 %v1189
        %v1227 = vpack.c.b16 %v1212, %v1211
        %v1228 = vpack.c.b16 %v1214, %v1213
        %v1229 = vpack.c.b16 %v1216, %v1215
        %v1230 = vpack.c.b16 %v1218, %v1217
        %v1231 = vpack.c.b16 %v1220, %v1219
        %v1232 = vpack.c.b16 %v1222, %v1221
        %v1233 = vpack.c.b16 %v1224, %v1223
        %v1234 = vpack.c.b16 %v1226, %v1225
        %1243 = vmatprep.subr.bf16.mxu0 0
        %1244 = vmatpush1.bf16.msra.mxu0 %v1227
        %1245 = vmatprep.subr.bf16.mxu0 0
        %1246 = vmatpush1.bf16.msra.mxu0 %v1228
        %1247 = vmatprep.subr.bf16.mxu0 0
        %1248 = vmatpush1.bf16.msra.mxu0 %v1229
        %1249 = vmatprep.subr.bf16.mxu0 0
        %1250 = vmatpush1.bf16.msra.mxu0 %v1230
        %1251 = vmatprep.subr.bf16.mxu0 0
        %1252 = vmatpush1.bf16.msra.mxu0 %v1231
        %1253 = vmatprep.subr.bf16.mxu0 0
        %1254 = vmatpush1.bf16.msra.mxu0 %v1232
        %1255 = vmatprep.subr.bf16.mxu0 0
        %1256 = vmatpush1.bf16.msra.mxu0 %v1233
        %1257 = vmatprep.subr.bf16.mxu0 0
        %1258 = vmatpush1.bf16.msra.mxu0 %v1234
        %1259 = vmatprep.subr.bf16.mxu0 0
        %1260 = vmatpush1.bf16.msra.mxu0 0
        %1261 = vmatprep.subr.bf16.mxu0 0
        %1262 = vmatpush1.bf16.msra.mxu0 0
        %1263 = vmatprep.subr.bf16.mxu0 0
        %1264 = vmatpush1.bf16.msra.mxu0 0
        %1265 = vmatprep.subr.bf16.mxu0 0
        %1266 = vmatpush1.bf16.msra.mxu0 0
        %1267 = vmatprep.subr.bf16.mxu0 0
        %1268 = vmatpush1.bf16.msra.mxu0 0
        %1269 = vmatprep.subr.bf16.mxu0 0
        %1270 = vmatpush1.bf16.msra.mxu0 0
        %1271 = vmatprep.subr.bf16.mxu0 0
        %1272 = vmatpush1.bf16.msra.mxu0 0
        %1273 = vmatprep.subr.bf16.mxu0 0
        %1274 = vmatpush1.bf16.msra.mxu0 0
        %1275 = vmatprep.mubr.bf16.mxu0 0
        %1276 = vmatmul.mubr.bf16.gmra.mrb[0].mxu0 %v1190
        %v1277 = vpop.f32.mrb[0].mxu0
        %v1278 = vadd.f32 %v1194, %v1277
        %v1279 = vpop.f32.mrb[0].mxu0
        %v1280 = vpop.f32.mrb[0].mxu0
        %v1281 = vpop.f32.mrb[0].mxu0
        %1282 = vdwg.mxu0
        %v1283 = vlaneseq
        %v1284 = vshrl.u32 %v1283, 7
        %v1285 = vsub.s32 0, %v1284
        %v1286 = vrot.slane %v1168, %v1285
        %v1287 = vadd.f32 %v1278, %v1286
        %v1288 = vmul.f32 %v1287, 0.01
        %v1289 = vmax.f32 %v1287, %v1288
        %s1290 = scalar_lea.vmem [#allocation2], 384
        %v1291 = vld [vmem:[%s1290] sm:$0xf]
        %v1292 = vld [vmem:[%s1290 + $0x4] sm:$0xf]
        %v1293 = vld [vmem:[%s1290 + $0x8] sm:$0xf]
        %v1294 = vld [vmem:[%s1290 + $0xc] sm:$0xf]
        %v1295 = vld [vmem:[%s1290 + $0x10] sm:$0xf]
        %v1296 = vld [vmem:[%s1290 + $0x14] sm:$0xf]
        %v1297 = vld [vmem:[%s1290 + $0x18] sm:$0xf]
        %v1298 = vld [vmem:[%s1290 + $0x1c] sm:$0xf]
        %v1299 = vld [vmem:[%s1290 + $0x20] sm:$0xf]
        %v1300 = vld [vmem:[%s1290 + $0x24] sm:$0xf]
        %v1301 = vld [vmem:[%s1290 + $0x28] sm:$0xf]
        %v1302 = vld [vmem:[%s1290 + $0x2c] sm:$0xf]
        %v1303 = vld [vmem:[%s1290 + $0x30] sm:$0xf]
        %v1304 = vld [vmem:[%s1290 + $0x34] sm:$0xf]
        %v1305 = vld [vmem:[%s1290 + $0x38] sm:$0xf]
        %v1306 = vld [vmem:[%s1290 + $0x3c] sm:$0xf]
        %v1307 = vpack.c.bf16 %v1289, %v1289
        %v1308 = vlaneseq
        %v1309 = vshrl.u32 %v1308, 7
        %v1310 = vsub.s32 0, %v1309
        %v1311 = vrot.slane %v252, %v1310
        %v1328 = vunpack.c.l.b16 %v1291
        %v1329 = vunpack.c.l.b16 %v1292
        %v1330 = vunpack.c.l.b16 %v1293
        %v1331 = vunpack.c.l.b16 %v1294
        %v1332 = vunpack.c.l.b16 %v1295
        %v1333 = vunpack.c.l.b16 %v1296
        %v1334 = vunpack.c.l.b16 %v1297
        %v1335 = vunpack.c.l.b16 %v1298
        %v1336 = vunpack.c.l.b16 %v1299
        %v1337 = vunpack.c.l.b16 %v1300
        %v1338 = vunpack.c.l.b16 %v1301
        %v1339 = vunpack.c.l.b16 %v1302
        %v1340 = vunpack.c.l.b16 %v1303
        %v1341 = vunpack.c.l.b16 %v1304
        %v1342 = vunpack.c.l.b16 %v1305
        %v1343 = vunpack.c.l.b16 %v1306
        %v1344 = vpack.c.b16 %v1329, %v1328
        %v1345 = vpack.c.b16 %v1331, %v1330
        %v1346 = vpack.c.b16 %v1333, %v1332
        %v1347 = vpack.c.b16 %v1335, %v1334
        %v1348 = vpack.c.b16 %v1337, %v1336
        %v1349 = vpack.c.b16 %v1339, %v1338
        %v1350 = vpack.c.b16 %v1341, %v1340
        %v1351 = vpack.c.b16 %v1343, %v1342
        %1360 = vmatprep.subr.bf16.mxu0 0
        %1361 = vmatpush1.bf16.msra.mxu0 %v1344
        %1362 = vmatprep.subr.bf16.mxu0 0
        %1363 = vmatpush1.bf16.msra.mxu0 %v1345
        %1364 = vmatprep.subr.bf16.mxu0 0
        %1365 = vmatpush1.bf16.msra.mxu0 %v1346
        %1366 = vmatprep.subr.bf16.mxu0 0
        %1367 = vmatpush1.bf16.msra.mxu0 %v1347
        %1368 = vmatprep.subr.bf16.mxu0 0
        %1369 = vmatpush1.bf16.msra.mxu0 %v1348
        %1370 = vmatprep.subr.bf16.mxu0 0
        %1371 = vmatpush1.bf16.msra.mxu0 %v1349
        %1372 = vmatprep.subr.bf16.mxu0 0
        %1373 = vmatpush1.bf16.msra.mxu0 %v1350
        %1374 = vmatprep.subr.bf16.mxu0 0
        %1375 = vmatpush1.bf16.msra.mxu0 %v1351
        %1376 = vmatprep.subr.bf16.mxu0 0
        %1377 = vmatpush1.bf16.msra.mxu0 0
        %1378 = vmatprep.subr.bf16.mxu0 0
        %1379 = vmatpush1.bf16.msra.mxu0 0
        %1380 = vmatprep.subr.bf16.mxu0 0
        %1381 = vmatpush1.bf16.msra.mxu0 0
        %1382 = vmatprep.subr.bf16.mxu0 0
        %1383 = vmatpush1.bf16.msra.mxu0 0
        %1384 = vmatprep.subr.bf16.mxu0 0
        %1385 = vmatpush1.bf16.msra.mxu0 0
        %1386 = vmatprep.subr.bf16.mxu0 0
        %1387 = vmatpush1.bf16.msra.mxu0 0
        %1388 = vmatprep.subr.bf16.mxu0 0
        %1389 = vmatpush1.bf16.msra.mxu0 0
        %1390 = vmatprep.subr.bf16.mxu0 0
        %1391 = vmatpush1.bf16.msra.mxu0 0
        %1392 = vmatprep.mubr.bf16.mxu0 0
        %1393 = vmatmul.mubr.bf16.gmra.mrb[0].mxu0 %v1307
        %v1394 = vpop.f32.mrb[0].mxu0
        %v1395 = vadd.f32 %v1311, %v1394
        %v1396 = vpop.f32.mrb[0].mxu0
        %v1397 = vpop.f32.mrb[0].mxu0
        %v1398 = vpop.f32.mrb[0].mxu0
        %1399 = vdwg.mxu0
        %v1400 = vmul.f32 %v1395, 0.01
        %v1401 = vmax.f32 %v1395, %v1400
        %s1402 = scalar_lea.vmem [#allocation2], 448
        %v1403 = vld [vmem:[%s1402] sm:$0xf]
        %v1404 = vld [vmem:[%s1402 + $0x4] sm:$0xf]
        %v1405 = vld [vmem:[%s1402 + $0x8] sm:$0xf]
        %v1406 = vld [vmem:[%s1402 + $0xc] sm:$0xf]
        %v1407 = vld [vmem:[%s1402 + $0x10] sm:$0xf]
        %v1408 = vld [vmem:[%s1402 + $0x14] sm:$0xf]
        %v1409 = vld [vmem:[%s1402 + $0x18] sm:$0xf]
        %v1410 = vld [vmem:[%s1402 + $0x1c] sm:$0xf]
        %v1411 = vld [vmem:[%s1402 + $0x20] sm:$0xf]
        %v1412 = vld [vmem:[%s1402 + $0x24] sm:$0xf]
        %v1413 = vld [vmem:[%s1402 + $0x28] sm:$0xf]
        %v1414 = vld [vmem:[%s1402 + $0x2c] sm:$0xf]
        %v1415 = vld [vmem:[%s1402 + $0x30] sm:$0xf]
        %v1416 = vld [vmem:[%s1402 + $0x34] sm:$0xf]
        %v1417 = vld [vmem:[%s1402 + $0x38] sm:$0xf]
        %v1418 = vld [vmem:[%s1402 + $0x3c] sm:$0xf]
        %v1419 = vpack.c.bf16 %v1401, %v1401
        %v1420 = vlaneseq
        %v1421 = vshrl.u32 %v1420, 7
        %v1422 = vsub.s32 1, %v1421
        %v1423 = vrot.slane %v252, %v1422
        %v1440 = vunpack.c.l.b16 %v1403
        %v1441 = vunpack.c.l.b16 %v1404
        %v1442 = vunpack.c.l.b16 %v1405
        %v1443 = vunpack.c.l.b16 %v1406
        %v1444 = vunpack.c.l.b16 %v1407
        %v1445 = vunpack.c.l.b16 %v1408
        %v1446 = vunpack.c.l.b16 %v1409
        %v1447 = vunpack.c.l.b16 %v1410
        %v1448 = vunpack.c.l.b16 %v1411
        %v1449 = vunpack.c.l.b16 %v1412
        %v1450 = vunpack.c.l.b16 %v1413
        %v1451 = vunpack.c.l.b16 %v1414
        %v1452 = vunpack.c.l.b16 %v1415
        %v1453 = vunpack.c.l.b16 %v1416
        %v1454 = vunpack.c.l.b16 %v1417
        %v1455 = vunpack.c.l.b16 %v1418
        %v1456 = vpack.c.b16 %v1441, %v1440
        %v1457 = vpack.c.b16 %v1443, %v1442
        %v1458 = vpack.c.b16 %v1445, %v1444
        %v1459 = vpack.c.b16 %v1447, %v1446
        %v1460 = vpack.c.b16 %v1449, %v1448
        %v1461 = vpack.c.b16 %v1451, %v1450
        %v1462 = vpack.c.b16 %v1453, %v1452
        %v1463 = vpack.c.b16 %v1455, %v1454
        %1472 = vmatprep.subr.bf16.mxu0 0
        %1473 = vmatpush1.bf16.msra.mxu0 %v1456
        %1474 = vmatprep.subr.bf16.mxu0 0
        %1475 = vmatpush1.bf16.msra.mxu0 %v1457
        %1476 = vmatprep.subr.bf16.mxu0 0
        %1477 = vmatpush1.bf16.msra.mxu0 %v1458
        %1478 = vmatprep.subr.bf16.mxu0 0
        %1479 = vmatpush1.bf16.msra.mxu0 %v1459
        %1480 = vmatprep.subr.bf16.mxu0 0
        %1481 = vmatpush1.bf16.msra.mxu0 %v1460
        %1482 = vmatprep.subr.bf16.mxu0 0
        %1483 = vmatpush1.bf16.msra.mxu0 %v1461
        %1484 = vmatprep.subr.bf16.mxu0 0
        %1485 = vmatpush1.bf16.msra.mxu0 %v1462
        %1486 = vmatprep.subr.bf16.mxu0 0
        %1487 = vmatpush1.bf16.msra.mxu0 %v1463
        %1488 = vmatprep.subr.bf16.mxu0 0
        %1489 = vmatpush1.bf16.msra.mxu0 0
        %1490 = vmatprep.subr.bf16.mxu0 0
        %1491 = vmatpush1.bf16.msra.mxu0 0
        %1492 = vmatprep.subr.bf16.mxu0 0
        %1493 = vmatpush1.bf16.msra.mxu0 0
        %1494 = vmatprep.subr.bf16.mxu0 0
        %1495 = vmatpush1.bf16.msra.mxu0 0
        %1496 = vmatprep.subr.bf16.mxu0 0
        %1497 = vmatpush1.bf16.msra.mxu0 0
        %1498 = vmatprep.subr.bf16.mxu0 0
        %1499 = vmatpush1.bf16.msra.mxu0 0
        %1500 = vmatprep.subr.bf16.mxu0 0
        %1501 = vmatpush1.bf16.msra.mxu0 0
        %1502 = vmatprep.subr.bf16.mxu0 0
        %1503 = vmatpush1.bf16.msra.mxu0 0
        %1504 = vmatprep.mubr.bf16.mxu0 0
        %1505 = vmatmul.mubr.bf16.gmra.mrb[0].mxu0 %v1419
        %v1506 = vpop.f32.mrb[0].mxu0
        %v1507 = vadd.f32 %v1423, %v1506
        %v1508 = vpop.f32.mrb[0].mxu0
        %v1509 = vpop.f32.mrb[0].mxu0
        %v1510 = vpop.f32.mrb[0].mxu0
        %1511 = vdwg.mxu0
        %v1512 = vpack.c.bf16 %v1507, %v1507
        %1513 = vst [vmem:[%s245] sm:$0xf] %v1512
        %s1514 = sand.u32 %s139, 1
        %s1515 = scalar_lea.sflag [#allocation4], %s1514
        %s1516 = sand.u32 %s139, 1
        %s1517 = smul.addr %s1516, 4
        %s1518 = scalar_lea.vmem [#allocation7], %s1517
        // Predicated region
        $region49: #{tpu_custom_call.1} parent=39 // pred_check
          %p1519 = pneg %p149
        $region50: #{tpu_custom_call.1} parent=39 // pred_check_branch
          %1521 = sbr.rel (%p1519) target = $region52
        $region51: #{tpu_custom_call.1} parent=39 // pred_region
          %s1523 = ssub.s32 64, 64
          %1524 = vsyncadd %s1515, %s1523
          %s1525 = smul.addr %s21, 64
          %s1526 = scalar_lea.hbm %s5, %s1525
          %s1528 = sshll.u32 %s1518, 4
          %s1529 = int_to_ptr.vmem [resolvable:$true] %s1528
          %1531 = dma.vmem_to_hbm [thread:$0]  %s1529, 64, %s1526, %s1515
        $region52: #{tpu_custom_call.1} parent=39 // pred_fallthru
          _
      $region40: #{tpu_custom_call.1} parent=5 // pred_fallthru
        _
      %p1532 = scmp.le.s32.totalorder 2, %s16
      // Predicated region
      $region53: #{tpu_custom_call.1} parent=5 // pred_check
        %p1533 = pneg %p1532
      $region54: #{tpu_custom_call.1} parent=5 // pred_check_branch
        %1535 = sbr.rel (%p1533) target = $region56
      $region55: #{tpu_custom_call.1} parent=5 // pred_region
        %s1536 = ssub.s32 %s16, 2
        // Predicated region
        $region57: #{tpu_custom_call.1} parent=55 // pred_check
          %p1537 = pneg %p155
        $region58: #{tpu_custom_call.1} parent=55 // pred_check_branch
          %1539 = sbr.rel (%p1537) target = $region60
        $region59: #{tpu_custom_call.1} parent=55 // pred_region
          %s1540 = sand.u32 %s140, 1
          %s1541 = scalar_lea.sflag [#allocation4], %s1540
          %s1542 = sand.u32 %s140, 1
          %s1543 = smul.addr %s1542, 4
          %s1544 = scalar_lea.vmem [#allocation7], %s1543
          %1545 = dma.done %s1541, 64
        $region60: #{tpu_custom_call.1} parent=55 // pred_fallthru
          _
      $region56: #{tpu_custom_call.1} parent=5 // pred_fallthru
        _
    $region6: #{tpu_custom_call.1} parent=1 // loop_footer
      %s20 = sadd.s32 1, %s16
    $region7: #{tpu_custom_call.1} parent=1 // loop_footer_branch
      %15 = sbr.rel target = $region3
    $region8: #{tpu_custom_call.1} parent=1 // loop_exit
      _
    %1546 = vsyncpa [#allocation3], 1
    %s1547 = scalar_lea.sflag [#allocation3], 1
    %1548 = vsyncpa %s1547, 1
    %1549 = vsyncpa [#allocation6], 1
    %1550 = vsyncpa [#allocation4], 1
    %s1551 = scalar_lea.sflag [#allocation4], 1
    %1552 = vsyncpa %s1551, 1

</llo_original>
